<compile_context>
chip_gen: v7x
topology: tpu7x:2x2x1
jax: 0.10.0
libtpu: 0.0.40
codegen_flags: <defaults>
</compile_context>

<pallas_src>
import functools

import jax
import jax.numpy as jnp
from jax.experimental import pallas as pl
from jax.experimental.pallas import tpu as pltpu


def _round_up(v: int, m: int) -> int:
    return ((v + m - 1) // m) * m


def _gaussian_smearing_kernel(off_ref, x_ref, o_ref, *, coeff):
    # off_ref: (1, G) f32 centers;  x_ref: (TM, 1) f32;  o_ref: (TM, G)
    d = x_ref[...] - off_ref[...]                 # (TM, G) via broadcast (VPU)
    o_ref[...] = jnp.exp(coeff * d * d).astype(o_ref.dtype)   # exp on EUP


def gaussian_smearing(x, *, rbf_radius: float = 1.0, num_gaussians: int = 50,
                      tile_m: int = 8192, out_dtype=jnp.float32):
    """Pallas implementation of GaussianSmearing.forward.

    Args:
      x: float array of any shape.
      out_dtype: output dtype (float32 matches the PyTorch module; bfloat16
        halves HBM writeback if the consumer tolerates it).
    Returns:
      Array of shape (*x.shape, num_gaussians).
    """
    coeff = -0.5 * ((num_gaussians - 1) / rbf_radius) ** 2
    # Exact linspace centers (the module's registered buffer).
    offset = jnp.linspace(0.0, rbf_radius, num_gaussians,
                          dtype=jnp.float32).reshape(1, num_gaussians)

    orig_shape = x.shape
    xf = x.astype(jnp.float32).reshape(-1, 1)     # (N, 1), metadata-only
    n = xf.shape[0]

    # Row-tile size: big to amortize per-step overhead, shrunk for tiny inputs.
    # Multiple of 16 keeps the sublane constraint satisfied for f32 and bf16.
    tm = max(16, min(_round_up(tile_m, 16), _round_up(n, 16)))
    grid = (pl.cdiv(n, tm),)                      # ragged last block is masked

    # Explicit VMEM budget (double-buffered, lane-padded):
    #   x   block (tm, 1)  f32 -> tm * 128 * 4 bytes per buffer
    #   out block (tm, G)       -> tm * round_up(G,128) * itemsize per buffer
    # plus the tiny (1, G) centers block and some slack.
    out_lanes = _round_up(num_gaussians, 128)
    out_itemsize = jnp.dtype(out_dtype).itemsize
    vmem_bytes = (2 * tm * 128 * 4
                  + 2 * tm * out_lanes * out_itemsize
                  + (4 << 20))                    # slack for centers/internal

    out = pl.pallas_call(
        functools.partial(_gaussian_smearing_kernel, coeff=coeff),
        out_shape=jax.ShapeDtypeStruct((n, num_gaussians), out_dtype),
        grid_spec=pltpu.PrefetchScalarGridSpec(
            num_scalar_prefetch=0,
            grid=grid,
            in_specs=[
                # Constant block index -> fetched once, reused every step.
                pl.BlockSpec((1, num_gaussians), lambda i: (0, 0)),
                pl.BlockSpec((tm, 1), lambda i: (i, 0)),
            ],
            out_specs=pl.BlockSpec((tm, num_gaussians), lambda i: (i, 0)),
        ),
        compiler_params=pltpu.CompilerParams(
            dimension_semantics=("parallel",),
            vmem_limit_bytes=int(vmem_bytes)),
    )(offset, xf)

    return out.reshape(*orig_shape, num_gaussians)


def _reference(x, *, rbf_radius: float = 1.0, num_gaussians: int = 50):
    coeff = -0.5 * ((num_gaussians - 1) / rbf_radius) ** 2
    offset = jnp.linspace(0.0, rbf_radius, num_gaussians, dtype=jnp.float32)
    d = x.astype(jnp.float32)[..., None] - offset
    return jnp.exp(coeff * d * d)


if __name__ == "__main__":
    key = jax.random.PRNGKey(0)

    # Main check: distances for a small batch, values in [0, 1).
    x = jax.random.uniform(key, (2, 4, 16, 16), dtype=jnp.float32)
    out = gaussian_smearing(x, rbf_radius=1.0, num_gaussians=50)
    out = jax.block_until_ready(out)
    ref = _reference(x, rbf_radius=1.0, num_gaussians=50)
    assert out.shape == (2, 4, 16, 16, 50), out.shape
    assert jnp.allclose(out, ref, atol=1e-5, rtol=1e-5), float(
        jnp.max(jnp.abs(out - ref)))

    # Ragged-N check: n = 21 rows, not a multiple of the tile -> exercises
    # Pallas' masked last block (no wrapper pad / slice anymore).
    x2 = jax.random.uniform(jax.random.PRNGKey(1), (3, 7), dtype=jnp.float32)
    out2 = jax.block_until_ready(gaussian_smearing(x2, rbf_radius=0.5,
                                                   num_gaussians=50))
    ref2 = _reference(x2, rbf_radius=0.5, num_gaussians=50)
    assert out2.shape == (3, 7, 50), out2.shape
    assert jnp.allclose(out2, ref2, atol=1e-5, rtol=1e-5), float(
        jnp.max(jnp.abs(out2 - ref2)))

    # Multi-step-grid check (small tile_m forces several grid steps, also
    # validates the once-fetched constant centers block).
    out3 = jax.block_until_ready(gaussian_smearing(x, tile_m=256))
    assert jnp.allclose(out3, ref, atol=1e-5, rtol=1e-5), float(
        jnp.max(jnp.abs(out3 - ref)))

    print("KERNEL_OK")
</pallas_src>

<mosaic_0001>
module attributes {stable_mosaic.version = 11 : i64} {
  func.func @_gaussian_smearing_kernel(%arg0: i32, %arg1: memref<1x50xf32, #tpu.memory_space<vmem>>, %arg2: memref<2048x1xf32, #tpu.memory_space<vmem>>, %arg3: memref<2048x50xf32, #tpu.memory_space<vmem>>) attributes {dimension_semantics = [#tpu.dimension_semantics<parallel>], iteration_bounds = array<i64: 1>, scalar_prefetch = 0 : i64, scratch_operands = 0 : i64, tpu.core_type = #tpu.core_type<tc>, window_params = [{pipeline_mode = #tpu.pipeline_mode<synchronous>, transform_indices = @transform_0, window_bounds = array<i64: 1, 50>}, {transform_indices = @transform_1, window_bounds = array<i64: 2048, 1>}, {transform_indices = @transform_2, window_bounds = array<i64: 2048, 50>}]} {
    %c0 = arith.constant 0 : index
    %c0_0 = arith.constant 0 : index
    %0 = vector.load %arg2[%c0, %c0_0] : memref<2048x1xf32, #tpu.memory_space<vmem>>, vector<2048x1xf32>
    %c0_1 = arith.constant 0 : index
    %c0_2 = arith.constant 0 : index
    %1 = vector.load %arg1[%c0_1, %c0_2] : memref<1x50xf32, #tpu.memory_space<vmem>>, vector<1x50xf32>
    %2 = vector.broadcast %0 : vector<2048x1xf32> to vector<2048x50xf32>
    %3 = vector.broadcast %1 : vector<1x50xf32> to vector<2048x50xf32>
    %4 = arith.subf %2, %3 : vector<2048x50xf32>
    %cst = arith.constant -1.200500e+03 : f32
    %5 = vector.broadcast %cst : f32 to vector<2048x50xf32>
    %6 = arith.mulf %5, %4 : vector<2048x50xf32>
    %7 = arith.mulf %6, %4 : vector<2048x50xf32>
    %8 = math.exp %7 : vector<2048x50xf32>
    %c0_3 = arith.constant 0 : index
    %c0_4 = arith.constant 0 : index
    %9 = vector.load %arg3[%c0_3, %c0_4] : memref<2048x50xf32, #tpu.memory_space<vmem>>, vector<2048x50xf32>
    tpu.vector_store %arg3[%c0_3, %c0_4], %8 {strides = array<i32>} : memref<2048x50xf32, #tpu.memory_space<vmem>>, vector<2048x50xf32>,
    return
  }
  func.func @transform_0(%arg0: i32) -> (i32, i32) {
    %c0_i32 = arith.constant 0 : i32
    %c0_i32_0 = arith.constant 0 : i32
    %c0_i32_1 = arith.constant 0 : i32
    return %c0_i32, %c0_i32_0 : i32, i32
  }
  func.func @transform_1(%arg0: i32) -> (i32, i32) {
    %c0_i32 = arith.constant 0 : i32
    %c0_i32_0 = arith.constant 0 : i32
    return %arg0, %c0_i32 : i32, i32
  }
  func.func @transform_2(%arg0: i32) -> (i32, i32) {
    %c0_i32 = arith.constant 0 : i32
    %c0_i32_0 = arith.constant 0 : i32
    return %arg0, %c0_i32 : i32, i32
  }
}

</mosaic_0001>

<llo_original>
// kernel: tpu_custom_call.1
$region0: #{tpu_custom_call.1}
  #allocation0 [shape = 'u32[]', space=smem, size = 0x4, offset = 0x4, fixed_abs, tag = 'smem constant byte address 0x4 - core index']
  #allocation1 [shape = 'u32[144,128]{1,0:T(1,128)}', space=vmem, size = 0x12000, scoped, tag = 'internal scratch']
  %s0 = inlined_call_operand.vmem [shape: f32[1,50], index: 0, kind: input, shape index: {}]
  %s1 = inlined_call_operand.vmem [shape: f32[2048,1], index: 1, kind: input, shape index: {}]
  %s2 = inlined_call_operand.vmem [shape: f32[2048,50], index: 2, kind: output, shape index: {}]
  %s3 = sld [smem:[#allocation0]]
  $region18: #{tpu_custom_call.1} parent=0
    _
  %s5 = ssub.s32 1, %s3
  %s6 = scalar_select 0, %s5, %s3
  // Predicated region
  $region2: #{tpu_custom_call.1} parent=0 // pred_check
    _
  $region3: #{tpu_custom_call.1} parent=0 // pred_check_branch
    %8 = sbr.rel (0) target = $region5
  $region4: #{tpu_custom_call.1} parent=0 // pred_region
    _
  $region5: #{tpu_custom_call.1} parent=0 // pred_fallthru
    _
  // Predicated region
  $region6: #{tpu_custom_call.1} parent=0 // pred_check
    _
  $region7: #{tpu_custom_call.1} parent=0 // pred_check_branch
    %10 = sbr.rel (0) target = $region9
  $region8: #{tpu_custom_call.1} parent=0 // pred_region
    _
  $region9: #{tpu_custom_call.1} parent=0 // pred_fallthru
    _
  %v11 = vld [vmem:[%s1] sm:$0xff]
  %v12 = vld [vmem:[%s1 + $0x8] sm:$0xff]
  %v13 = vld [vmem:[%s1 + $0x10] sm:$0xff]
  %v14 = vld [vmem:[%s1 + $0x18] sm:$0xff]
  %v15 = vld [vmem:[%s1 + $0x20] sm:$0xff]
  %v16 = vld [vmem:[%s1 + $0x28] sm:$0xff]
  %v17 = vld [vmem:[%s1 + $0x30] sm:$0xff]
  %v18 = vld [vmem:[%s1 + $0x38] sm:$0xff]
  %v19 = vld [vmem:[%s1 + $0x40] sm:$0xff]
  %v20 = vld [vmem:[%s1 + $0x48] sm:$0xff]
  %v21 = vld [vmem:[%s1 + $0x50] sm:$0xff]
  %v22 = vld [vmem:[%s1 + $0x58] sm:$0xff]
  %v23 = vld [vmem:[%s1 + $0x60] sm:$0xff]
  %v24 = vld [vmem:[%s1 + $0x68] sm:$0xff]
  %v25 = vld [vmem:[%s1 + $0x70] sm:$0xff]
  %v26 = vld [vmem:[%s1 + $0x78] sm:$0xff]
  %v27 = vld [vmem:[%s1 + $0x80] sm:$0xff]
  %v28 = vld [vmem:[%s1 + $0x88] sm:$0xff]
  %v29 = vld [vmem:[%s1 + $0x90] sm:$0xff]
  %v30 = vld [vmem:[%s1 + $0x98] sm:$0xff]
  %v31 = vld [vmem:[%s1 + $0xa0] sm:$0xff]
  %v32 = vld [vmem:[%s1 + $0xa8] sm:$0xff]
  %v33 = vld [vmem:[%s1 + $0xb0] sm:$0xff]
  %v34 = vld [vmem:[%s1 + $0xb8] sm:$0xff]
  %v35 = vld [vmem:[%s1 + $0xc0] sm:$0xff]
  %v36 = vld [vmem:[%s1 + $0xc8] sm:$0xff]
  %v37 = vld [vmem:[%s1 + $0xd0] sm:$0xff]
  %v38 = vld [vmem:[%s1 + $0xd8] sm:$0xff]
  %v39 = vld [vmem:[%s1 + $0xe0] sm:$0xff]
  %v40 = vld [vmem:[%s1 + $0xe8] sm:$0xff]
  %v41 = vld [vmem:[%s1 + $0xf0] sm:$0xff]
  %v42 = vld [vmem:[%s1 + $0xf8] sm:$0xff]
  %v43 = vld [vmem:[%s1 + $0x100] sm:$0xff]
  %v44 = vld [vmem:[%s1 + $0x108] sm:$0xff]
  %v45 = vld [vmem:[%s1 + $0x110] sm:$0xff]
  %v46 = vld [vmem:[%s1 + $0x118] sm:$0xff]
  %v47 = vld [vmem:[%s1 + $0x120] sm:$0xff]
  %v48 = vld [vmem:[%s1 + $0x128] sm:$0xff]
  %v49 = vld [vmem:[%s1 + $0x130] sm:$0xff]
  %v50 = vld [vmem:[%s1 + $0x138] sm:$0xff]
  %v51 = vld [vmem:[%s1 + $0x140] sm:$0xff]
  %v52 = vld [vmem:[%s1 + $0x148] sm:$0xff]
  %v53 = vld [vmem:[%s1 + $0x150] sm:$0xff]
  %v54 = vld [vmem:[%s1 + $0x158] sm:$0xff]
  %v55 = vld [vmem:[%s1 + $0x160] sm:$0xff]
  %v56 = vld [vmem:[%s1 + $0x168] sm:$0xff]
  %v57 = vld [vmem:[%s1 + $0x170] sm:$0xff]
  %v58 = vld [vmem:[%s1 + $0x178] sm:$0xff]
  %v59 = vld [vmem:[%s1 + $0x180] sm:$0xff]
  %v60 = vld [vmem:[%s1 + $0x188] sm:$0xff]
  %v61 = vld [vmem:[%s1 + $0x190] sm:$0xff]
  %v62 = vld [vmem:[%s1 + $0x198] sm:$0xff]
  %v63 = vld [vmem:[%s1 + $0x1a0] sm:$0xff]
  %v64 = vld [vmem:[%s1 + $0x1a8] sm:$0xff]
  %v65 = vld [vmem:[%s1 + $0x1b0] sm:$0xff]
  %v66 = vld [vmem:[%s1 + $0x1b8] sm:$0xff]
  %v67 = vld [vmem:[%s1 + $0x1c0] sm:$0xff]
  %v68 = vld [vmem:[%s1 + $0x1c8] sm:$0xff]
  %v69 = vld [vmem:[%s1 + $0x1d0] sm:$0xff]
  %v70 = vld [vmem:[%s1 + $0x1d8] sm:$0xff]
  %v71 = vld [vmem:[%s1 + $0x1e0] sm:$0xff]
  %v72 = vld [vmem:[%s1 + $0x1e8] sm:$0xff]
  %v73 = vld [vmem:[%s1 + $0x1f0] sm:$0xff]
  %v74 = vld [vmem:[%s1 + $0x1f8] sm:$0xff]
  %v75 = vld [vmem:[%s1 + $0x200] sm:$0xff]
  %v76 = vld [vmem:[%s1 + $0x208] sm:$0xff]
  %v77 = vld [vmem:[%s1 + $0x210] sm:$0xff]
  %v78 = vld [vmem:[%s1 + $0x218] sm:$0xff]
  %v79 = vld [vmem:[%s1 + $0x220] sm:$0xff]
  %v80 = vld [vmem:[%s1 + $0x228] sm:$0xff]
  %v81 = vld [vmem:[%s1 + $0x230] sm:$0xff]
  %v82 = vld [vmem:[%s1 + $0x238] sm:$0xff]
  %v83 = vld [vmem:[%s1 + $0x240] sm:$0xff]
  %v84 = vld [vmem:[%s1 + $0x248] sm:$0xff]
  %v85 = vld [vmem:[%s1 + $0x250] sm:$0xff]
  %v86 = vld [vmem:[%s1 + $0x258] sm:$0xff]
  %v87 = vld [vmem:[%s1 + $0x260] sm:$0xff]
  %v88 = vld [vmem:[%s1 + $0x268] sm:$0xff]
  %v89 = vld [vmem:[%s1 + $0x270] sm:$0xff]
  %v90 = vld [vmem:[%s1 + $0x278] sm:$0xff]
  %v91 = vld [vmem:[%s1 + $0x280] sm:$0xff]
  %v92 = vld [vmem:[%s1 + $0x288] sm:$0xff]
  %v93 = vld [vmem:[%s1 + $0x290] sm:$0xff]
  %v94 = vld [vmem:[%s1 + $0x298] sm:$0xff]
  %v95 = vld [vmem:[%s1 + $0x2a0] sm:$0xff]
  %v96 = vld [vmem:[%s1 + $0x2a8] sm:$0xff]
  %v97 = vld [vmem:[%s1 + $0x2b0] sm:$0xff]
  %v98 = vld [vmem:[%s1 + $0x2b8] sm:$0xff]
  %v99 = vld [vmem:[%s1 + $0x2c0] sm:$0xff]
  %v100 = vld [vmem:[%s1 + $0x2c8] sm:$0xff]
  %v101 = vld [vmem:[%s1 + $0x2d0] sm:$0xff]
  %v102 = vld [vmem:[%s1 + $0x2d8] sm:$0xff]
  %v103 = vld [vmem:[%s1 + $0x2e0] sm:$0xff]
  %v104 = vld [vmem:[%s1 + $0x2e8] sm:$0xff]
  %v105 = vld [vmem:[%s1 + $0x2f0] sm:$0xff]
  %v106 = vld [vmem:[%s1 + $0x2f8] sm:$0xff]
  %v107 = vld [vmem:[%s1 + $0x300] sm:$0xff]
  %v108 = vld [vmem:[%s1 + $0x308] sm:$0xff]
  %v109 = vld [vmem:[%s1 + $0x310] sm:$0xff]
  %v110 = vld [vmem:[%s1 + $0x318] sm:$0xff]
  %v111 = vld [vmem:[%s1 + $0x320] sm:$0xff]
  %v112 = vld [vmem:[%s1 + $0x328] sm:$0xff]
  %v113 = vld [vmem:[%s1 + $0x330] sm:$0xff]
  %v114 = vld [vmem:[%s1 + $0x338] sm:$0xff]
  %v115 = vld [vmem:[%s1 + $0x340] sm:$0xff]
  %v116 = vld [vmem:[%s1 + $0x348] sm:$0xff]
  %v117 = vld [vmem:[%s1 + $0x350] sm:$0xff]
  %v118 = vld [vmem:[%s1 + $0x358] sm:$0xff]
  %v119 = vld [vmem:[%s1 + $0x360] sm:$0xff]
  %v120 = vld [vmem:[%s1 + $0x368] sm:$0xff]
  %v121 = vld [vmem:[%s1 + $0x370] sm:$0xff]
  %v122 = vld [vmem:[%s1 + $0x378] sm:$0xff]
  %v123 = vld [vmem:[%s1 + $0x380] sm:$0xff]
  %v124 = vld [vmem:[%s1 + $0x388] sm:$0xff]
  %v125 = vld [vmem:[%s1 + $0x390] sm:$0xff]
  %v126 = vld [vmem:[%s1 + $0x398] sm:$0xff]
  %v127 = vld [vmem:[%s1 + $0x3a0] sm:$0xff]
  %v128 = vld [vmem:[%s1 + $0x3a8] sm:$0xff]
  %v129 = vld [vmem:[%s1 + $0x3b0] sm:$0xff]
  %v130 = vld [vmem:[%s1 + $0x3b8] sm:$0xff]
  %v131 = vld [vmem:[%s1 + $0x3c0] sm:$0xff]
  %v132 = vld [vmem:[%s1 + $0x3c8] sm:$0xff]
  %v133 = vld [vmem:[%s1 + $0x3d0] sm:$0xff]
  %v134 = vld [vmem:[%s1 + $0x3d8] sm:$0xff]
  %v135 = vld [vmem:[%s1 + $0x3e0] sm:$0xff]
  %v136 = vld [vmem:[%s1 + $0x3e8] sm:$0xff]
  %v137 = vld [vmem:[%s1 + $0x3f0] sm:$0xff]
  %v138 = vld [vmem:[%s1 + $0x3f8] sm:$0xff]
  %v139 = vld [vmem:[%s1 + $0x400] sm:$0xff]
  %v140 = vld [vmem:[%s1 + $0x408] sm:$0xff]
  %v141 = vld [vmem:[%s1 + $0x410] sm:$0xff]
  %v142 = vld [vmem:[%s1 + $0x418] sm:$0xff]
  %v143 = vld [vmem:[%s1 + $0x420] sm:$0xff]
  %v144 = vld [vmem:[%s1 + $0x428] sm:$0xff]
  %v145 = vld [vmem:[%s1 + $0x430] sm:$0xff]
  %v146 = vld [vmem:[%s1 + $0x438] sm:$0xff]
  %v147 = vld [vmem:[%s1 + $0x440] sm:$0xff]
  %v148 = vld [vmem:[%s1 + $0x448] sm:$0xff]
  %v149 = vld [vmem:[%s1 + $0x450] sm:$0xff]
  %v150 = vld [vmem:[%s1 + $0x458] sm:$0xff]
  %v151 = vld [vmem:[%s1 + $0x460] sm:$0xff]
  %v152 = vld [vmem:[%s1 + $0x468] sm:$0xff]
  %v153 = vld [vmem:[%s1 + $0x470] sm:$0xff]
  %v154 = vld [vmem:[%s1 + $0x478] sm:$0xff]
  %v155 = vld [vmem:[%s1 + $0x480] sm:$0xff]
  %v156 = vld [vmem:[%s1 + $0x488] sm:$0xff]
  %v157 = vld [vmem:[%s1 + $0x490] sm:$0xff]
  %v158 = vld [vmem:[%s1 + $0x498] sm:$0xff]
  %v159 = vld [vmem:[%s1 + $0x4a0] sm:$0xff]
  %v160 = vld [vmem:[%s1 + $0x4a8] sm:$0xff]
  %v161 = vld [vmem:[%s1 + $0x4b0] sm:$0xff]
  %v162 = vld [vmem:[%s1 + $0x4b8] sm:$0xff]
  %v163 = vld [vmem:[%s1 + $0x4c0] sm:$0xff]
  %v164 = vld [vmem:[%s1 + $0x4c8] sm:$0xff]
  %v165 = vld [vmem:[%s1 + $0x4d0] sm:$0xff]
  %v166 = vld [vmem:[%s1 + $0x4d8] sm:$0xff]
  %v167 = vld [vmem:[%s1 + $0x4e0] sm:$0xff]
  %v168 = vld [vmem:[%s1 + $0x4e8] sm:$0xff]
  %v169 = vld [vmem:[%s1 + $0x4f0] sm:$0xff]
  %v170 = vld [vmem:[%s1 + $0x4f8] sm:$0xff]
  %v171 = vld [vmem:[%s1 + $0x500] sm:$0xff]
  %v172 = vld [vmem:[%s1 + $0x508] sm:$0xff]
  %v173 = vld [vmem:[%s1 + $0x510] sm:$0xff]
  %v174 = vld [vmem:[%s1 + $0x518] sm:$0xff]
  %v175 = vld [vmem:[%s1 + $0x520] sm:$0xff]
  %v176 = vld [vmem:[%s1 + $0x528] sm:$0xff]
  %v177 = vld [vmem:[%s1 + $0x530] sm:$0xff]
  %v178 = vld [vmem:[%s1 + $0x538] sm:$0xff]
  %v179 = vld [vmem:[%s1 + $0x540] sm:$0xff]
  %v180 = vld [vmem:[%s1 + $0x548] sm:$0xff]
  %v181 = vld [vmem:[%s1 + $0x550] sm:$0xff]
  %v182 = vld [vmem:[%s1 + $0x558] sm:$0xff]
  %v183 = vld [vmem:[%s1 + $0x560] sm:$0xff]
  %v184 = vld [vmem:[%s1 + $0x568] sm:$0xff]
  %v185 = vld [vmem:[%s1 + $0x570] sm:$0xff]
  %v186 = vld [vmem:[%s1 + $0x578] sm:$0xff]
  %v187 = vld [vmem:[%s1 + $0x580] sm:$0xff]
  %v188 = vld [vmem:[%s1 + $0x588] sm:$0xff]
  %v189 = vld [vmem:[%s1 + $0x590] sm:$0xff]
  %v190 = vld [vmem:[%s1 + $0x598] sm:$0xff]
  %v191 = vld [vmem:[%s1 + $0x5a0] sm:$0xff]
  %v192 = vld [vmem:[%s1 + $0x5a8] sm:$0xff]
  %v193 = vld [vmem:[%s1 + $0x5b0] sm:$0xff]
  %v194 = vld [vmem:[%s1 + $0x5b8] sm:$0xff]
  %v195 = vld [vmem:[%s1 + $0x5c0] sm:$0xff]
  %v196 = vld [vmem:[%s1 + $0x5c8] sm:$0xff]
  %v197 = vld [vmem:[%s1 + $0x5d0] sm:$0xff]
  %v198 = vld [vmem:[%s1 + $0x5d8] sm:$0xff]
  %v199 = vld [vmem:[%s1 + $0x5e0] sm:$0xff]
  %v200 = vld [vmem:[%s1 + $0x5e8] sm:$0xff]
  %v201 = vld [vmem:[%s1 + $0x5f0] sm:$0xff]
  %v202 = vld [vmem:[%s1 + $0x5f8] sm:$0xff]
  %v203 = vld [vmem:[%s1 + $0x600] sm:$0xff]
  %v204 = vld [vmem:[%s1 + $0x608] sm:$0xff]
  %v205 = vld [vmem:[%s1 + $0x610] sm:$0xff]
  %v206 = vld [vmem:[%s1 + $0x618] sm:$0xff]
  %v207 = vld [vmem:[%s1 + $0x620] sm:$0xff]
  %v208 = vld [vmem:[%s1 + $0x628] sm:$0xff]
  %v209 = vld [vmem:[%s1 + $0x630] sm:$0xff]
  %v210 = vld [vmem:[%s1 + $0x638] sm:$0xff]
  %v211 = vld [vmem:[%s1 + $0x640] sm:$0xff]
  %v212 = vld [vmem:[%s1 + $0x648] sm:$0xff]
  %v213 = vld [vmem:[%s1 + $0x650] sm:$0xff]
  %v214 = vld [vmem:[%s1 + $0x658] sm:$0xff]
  %v215 = vld [vmem:[%s1 + $0x660] sm:$0xff]
  %v216 = vld [vmem:[%s1 + $0x668] sm:$0xff]
  %v217 = vld [vmem:[%s1 + $0x670] sm:$0xff]
  %v218 = vld [vmem:[%s1 + $0x678] sm:$0xff]
  %v219 = vld [vmem:[%s1 + $0x680] sm:$0xff]
  %v220 = vld [vmem:[%s1 + $0x688] sm:$0xff]
  %v221 = vld [vmem:[%s1 + $0x690] sm:$0xff]
  %v222 = vld [vmem:[%s1 + $0x698] sm:$0xff]
  %v223 = vld [vmem:[%s1 + $0x6a0] sm:$0xff]
  %v224 = vld [vmem:[%s1 + $0x6a8] sm:$0xff]
  %v225 = vld [vmem:[%s1 + $0x6b0] sm:$0xff]
  %v226 = vld [vmem:[%s1 + $0x6b8] sm:$0xff]
  %v227 = vld [vmem:[%s1 + $0x6c0] sm:$0xff]
  %v228 = vld [vmem:[%s1 + $0x6c8] sm:$0xff]
  %v229 = vld [vmem:[%s1 + $0x6d0] sm:$0xff]
  %v230 = vld [vmem:[%s1 + $0x6d8] sm:$0xff]
  %v231 = vld [vmem:[%s1 + $0x6e0] sm:$0xff]
  %v232 = vld [vmem:[%s1 + $0x6e8] sm:$0xff]
  %v233 = vld [vmem:[%s1 + $0x6f0] sm:$0xff]
  %v234 = vld [vmem:[%s1 + $0x6f8] sm:$0xff]
  %v235 = vld [vmem:[%s1 + $0x700] sm:$0xff]
  %v236 = vld [vmem:[%s1 + $0x708] sm:$0xff]
  %v237 = vld [vmem:[%s1 + $0x710] sm:$0xff]
  %v238 = vld [vmem:[%s1 + $0x718] sm:$0xff]
  %v239 = vld [vmem:[%s1 + $0x720] sm:$0xff]
  %v240 = vld [vmem:[%s1 + $0x728] sm:$0xff]
  %v241 = vld [vmem:[%s1 + $0x730] sm:$0xff]
  %v242 = vld [vmem:[%s1 + $0x738] sm:$0xff]
  %v243 = vld [vmem:[%s1 + $0x740] sm:$0xff]
  %v244 = vld [vmem:[%s1 + $0x748] sm:$0xff]
  %v245 = vld [vmem:[%s1 + $0x750] sm:$0xff]
  %v246 = vld [vmem:[%s1 + $0x758] sm:$0xff]
  %v247 = vld [vmem:[%s1 + $0x760] sm:$0xff]
  %v248 = vld [vmem:[%s1 + $0x768] sm:$0xff]
  %v249 = vld [vmem:[%s1 + $0x770] sm:$0xff]
  %v250 = vld [vmem:[%s1 + $0x778] sm:$0xff]
  %v251 = vld [vmem:[%s1 + $0x780] sm:$0xff]
  %v252 = vld [vmem:[%s1 + $0x788] sm:$0xff]
  %v253 = vld [vmem:[%s1 + $0x790] sm:$0xff]
  %v254 = vld [vmem:[%s1 + $0x798] sm:$0xff]
  %v255 = vld [vmem:[%s1 + $0x7a0] sm:$0xff]
  %v256 = vld [vmem:[%s1 + $0x7a8] sm:$0xff]
  %v257 = vld [vmem:[%s1 + $0x7b0] sm:$0xff]
  %v258 = vld [vmem:[%s1 + $0x7b8] sm:$0xff]
  %v259 = vld [vmem:[%s1 + $0x7c0] sm:$0xff]
  %v260 = vld [vmem:[%s1 + $0x7c8] sm:$0xff]
  %v261 = vld [vmem:[%s1 + $0x7d0] sm:$0xff]
  %v262 = vld [vmem:[%s1 + $0x7d8] sm:$0xff]
  %v263 = vld [vmem:[%s1 + $0x7e0] sm:$0xff]
  %v264 = vld [vmem:[%s1 + $0x7e8] sm:$0xff]
  %v265 = vld [vmem:[%s1 + $0x7f0] sm:$0xff]
  %v266 = vld [vmem:[%s1 + $0x7f8] sm:$0xff]
  %v267 = vld [vmem:[%s0] sm:$0x1]
  %269 = vset.pattern.permute.xlu0 0
  %270 = vperm.xlu0 %269, %v11
  %v271 = vpop.permute.xlu0 %270
  %274 = vset.pattern.permute.xlu0 0
  %275 = vperm.xlu0 %274, %v12
  %v276 = vpop.permute.xlu0 %275
  %279 = vset.pattern.permute.xlu0 0
  %280 = vperm.xlu0 %279, %v13
  %v281 = vpop.permute.xlu0 %280
  %284 = vset.pattern.permute.xlu0 0
  %285 = vperm.xlu0 %284, %v14
  %v286 = vpop.permute.xlu0 %285
  %289 = vset.pattern.permute.xlu0 0
  %290 = vperm.xlu0 %289, %v15
  %v291 = vpop.permute.xlu0 %290
  %294 = vset.pattern.permute.xlu0 0
  %295 = vperm.xlu0 %294, %v16
  %v296 = vpop.permute.xlu0 %295
  %299 = vset.pattern.permute.xlu0 0
  %300 = vperm.xlu0 %299, %v17
  %v301 = vpop.permute.xlu0 %300
  %304 = vset.pattern.permute.xlu0 0
  %305 = vperm.xlu0 %304, %v18
  %v306 = vpop.permute.xlu0 %305
  %309 = vset.pattern.permute.xlu0 0
  %310 = vperm.xlu0 %309, %v19
  %v311 = vpop.permute.xlu0 %310
  %314 = vset.pattern.permute.xlu0 0
  %315 = vperm.xlu0 %314, %v20
  %v316 = vpop.permute.xlu0 %315
  %319 = vset.pattern.permute.xlu0 0
  %320 = vperm.xlu0 %319, %v21
  %v321 = vpop.permute.xlu0 %320
  %324 = vset.pattern.permute.xlu0 0
  %325 = vperm.xlu0 %324, %v22
  %v326 = vpop.permute.xlu0 %325
  %329 = vset.pattern.permute.xlu0 0
  %330 = vperm.xlu0 %329, %v23
  %v331 = vpop.permute.xlu0 %330
  %334 = vset.pattern.permute.xlu0 0
  %335 = vperm.xlu0 %334, %v24
  %v336 = vpop.permute.xlu0 %335
  %339 = vset.pattern.permute.xlu0 0
  %340 = vperm.xlu0 %339, %v25
  %v341 = vpop.permute.xlu0 %340
  %344 = vset.pattern.permute.xlu0 0
  %345 = vperm.xlu0 %344, %v26
  %v346 = vpop.permute.xlu0 %345
  %349 = vset.pattern.permute.xlu0 0
  %350 = vperm.xlu0 %349, %v27
  %v351 = vpop.permute.xlu0 %350
  %354 = vset.pattern.permute.xlu0 0
  %355 = vperm.xlu0 %354, %v28
  %v356 = vpop.permute.xlu0 %355
  %359 = vset.pattern.permute.xlu0 0
  %360 = vperm.xlu0 %359, %v29
  %v361 = vpop.permute.xlu0 %360
  %364 = vset.pattern.permute.xlu0 0
  %365 = vperm.xlu0 %364, %v30
  %v366 = vpop.permute.xlu0 %365
  %369 = vset.pattern.permute.xlu0 0
  %370 = vperm.xlu0 %369, %v31
  %v371 = vpop.permute.xlu0 %370
  %374 = vset.pattern.permute.xlu0 0
  %375 = vperm.xlu0 %374, %v32
  %v376 = vpop.permute.xlu0 %375
  %379 = vset.pattern.permute.xlu0 0
  %380 = vperm.xlu0 %379, %v33
  %v381 = vpop.permute.xlu0 %380
  %384 = vset.pattern.permute.xlu0 0
  %385 = vperm.xlu0 %384, %v34
  %v386 = vpop.permute.xlu0 %385
  %389 = vset.pattern.permute.xlu0 0
  %390 = vperm.xlu0 %389, %v35
  %v391 = vpop.permute.xlu0 %390
  %394 = vset.pattern.permute.xlu0 0
  %395 = vperm.xlu0 %394, %v36
  %v396 = vpop.permute.xlu0 %395
  %399 = vset.pattern.permute.xlu0 0
  %400 = vperm.xlu0 %399, %v37
  %v401 = vpop.permute.xlu0 %400
  %404 = vset.pattern.permute.xlu0 0
  %405 = vperm.xlu0 %404, %v38
  %v406 = vpop.permute.xlu0 %405
  %409 = vset.pattern.permute.xlu0 0
  %410 = vperm.xlu0 %409, %v39
  %v411 = vpop.permute.xlu0 %410
  %414 = vset.pattern.permute.xlu0 0
  %415 = vperm.xlu0 %414, %v40
  %v416 = vpop.permute.xlu0 %415
  %419 = vset.pattern.permute.xlu0 0
  %420 = vperm.xlu0 %419, %v41
  %v421 = vpop.permute.xlu0 %420
  %424 = vset.pattern.permute.xlu0 0
  %425 = vperm.xlu0 %424, %v42
  %v426 = vpop.permute.xlu0 %425
  %429 = vset.pattern.permute.xlu0 0
  %430 = vperm.xlu0 %429, %v43
  %v431 = vpop.permute.xlu0 %430
  %434 = vset.pattern.permute.xlu0 0
  %435 = vperm.xlu0 %434, %v44
  %v436 = vpop.permute.xlu0 %435
  %439 = vset.pattern.permute.xlu0 0
  %440 = vperm.xlu0 %439, %v45
  %v441 = vpop.permute.xlu0 %440
  %444 = vset.pattern.permute.xlu0 0
  %445 = vperm.xlu0 %444, %v46
  %v446 = vpop.permute.xlu0 %445
  %449 = vset.pattern.permute.xlu0 0
  %450 = vperm.xlu0 %449, %v47
  %v451 = vpop.permute.xlu0 %450
  %454 = vset.pattern.permute.xlu0 0
  %455 = vperm.xlu0 %454, %v48
  %v456 = vpop.permute.xlu0 %455
  %459 = vset.pattern.permute.xlu0 0
  %460 = vperm.xlu0 %459, %v49
  %v461 = vpop.permute.xlu0 %460
  %464 = vset.pattern.permute.xlu0 0
  %465 = vperm.xlu0 %464, %v50
  %v466 = vpop.permute.xlu0 %465
  %469 = vset.pattern.permute.xlu0 0
  %470 = vperm.xlu0 %469, %v51
  %v471 = vpop.permute.xlu0 %470
  %474 = vset.pattern.permute.xlu0 0
  %475 = vperm.xlu0 %474, %v52
  %v476 = vpop.permute.xlu0 %475
  %479 = vset.pattern.permute.xlu0 0
  %480 = vperm.xlu0 %479, %v53
  %v481 = vpop.permute.xlu0 %480
  %484 = vset.pattern.permute.xlu0 0
  %485 = vperm.xlu0 %484, %v54
  %v486 = vpop.permute.xlu0 %485
  %489 = vset.pattern.permute.xlu0 0
  %490 = vperm.xlu0 %489, %v55
  %v491 = vpop.permute.xlu0 %490
  %494 = vset.pattern.permute.xlu0 0
  %495 = vperm.xlu0 %494, %v56
  %v496 = vpop.permute.xlu0 %495
  %499 = vset.pattern.permute.xlu0 0
  %500 = vperm.xlu0 %499, %v57
  %v501 = vpop.permute.xlu0 %500
  %504 = vset.pattern.permute.xlu0 0
  %505 = vperm.xlu0 %504, %v58
  %v506 = vpop.permute.xlu0 %505
  %509 = vset.pattern.permute.xlu0 0
  %510 = vperm.xlu0 %509, %v59
  %v511 = vpop.permute.xlu0 %510
  %514 = vset.pattern.permute.xlu0 0
  %515 = vperm.xlu0 %514, %v60
  %v516 = vpop.permute.xlu0 %515
  %519 = vset.pattern.permute.xlu0 0
  %520 = vperm.xlu0 %519, %v61
  %v521 = vpop.permute.xlu0 %520
  %524 = vset.pattern.permute.xlu0 0
  %525 = vperm.xlu0 %524, %v62
  %v526 = vpop.permute.xlu0 %525
  %529 = vset.pattern.permute.xlu0 0
  %530 = vperm.xlu0 %529, %v63
  %v531 = vpop.permute.xlu0 %530
  %534 = vset.pattern.permute.xlu0 0
  %535 = vperm.xlu0 %534, %v64
  %v536 = vpop.permute.xlu0 %535
  %539 = vset.pattern.permute.xlu0 0
  %540 = vperm.xlu0 %539, %v65
  %v541 = vpop.permute.xlu0 %540
  %544 = vset.pattern.permute.xlu0 0
  %545 = vperm.xlu0 %544, %v66
  %v546 = vpop.permute.xlu0 %545
  %549 = vset.pattern.permute.xlu0 0
  %550 = vperm.xlu0 %549, %v67
  %v551 = vpop.permute.xlu0 %550
  %554 = vset.pattern.permute.xlu0 0
  %555 = vperm.xlu0 %554, %v68
  %v556 = vpop.permute.xlu0 %555
  %559 = vset.pattern.permute.xlu0 0
  %560 = vperm.xlu0 %559, %v69
  %v561 = vpop.permute.xlu0 %560
  %564 = vset.pattern.permute.xlu0 0
  %565 = vperm.xlu0 %564, %v70
  %v566 = vpop.permute.xlu0 %565
  %569 = vset.pattern.permute.xlu0 0
  %570 = vperm.xlu0 %569, %v71
  %v571 = vpop.permute.xlu0 %570
  %574 = vset.pattern.permute.xlu0 0
  %575 = vperm.xlu0 %574, %v72
  %v576 = vpop.permute.xlu0 %575
  %579 = vset.pattern.permute.xlu0 0
  %580 = vperm.xlu0 %579, %v73
  %v581 = vpop.permute.xlu0 %580
  %584 = vset.pattern.permute.xlu0 0
  %585 = vperm.xlu0 %584, %v74
  %v586 = vpop.permute.xlu0 %585
  %589 = vset.pattern.permute.xlu0 0
  %590 = vperm.xlu0 %589, %v75
  %v591 = vpop.permute.xlu0 %590
  %594 = vset.pattern.permute.xlu0 0
  %595 = vperm.xlu0 %594, %v76
  %v596 = vpop.permute.xlu0 %595
  %599 = vset.pattern.permute.xlu0 0
  %600 = vperm.xlu0 %599, %v77
  %v601 = vpop.permute.xlu0 %600
  %604 = vset.pattern.permute.xlu0 0
  %605 = vperm.xlu0 %604, %v78
  %v606 = vpop.permute.xlu0 %605
  %609 = vset.pattern.permute.xlu0 0
  %610 = vperm.xlu0 %609, %v79
  %v611 = vpop.permute.xlu0 %610
  %614 = vset.pattern.permute.xlu0 0
  %615 = vperm.xlu0 %614, %v80
  %v616 = vpop.permute.xlu0 %615
  %619 = vset.pattern.permute.xlu0 0
  %620 = vperm.xlu0 %619, %v81
  %v621 = vpop.permute.xlu0 %620
  %624 = vset.pattern.permute.xlu0 0
  %625 = vperm.xlu0 %624, %v82
  %v626 = vpop.permute.xlu0 %625
  %629 = vset.pattern.permute.xlu0 0
  %630 = vperm.xlu0 %629, %v83
  %v631 = vpop.permute.xlu0 %630
  %634 = vset.pattern.permute.xlu0 0
  %635 = vperm.xlu0 %634, %v84
  %v636 = vpop.permute.xlu0 %635
  %639 = vset.pattern.permute.xlu0 0
  %640 = vperm.xlu0 %639, %v85
  %v641 = vpop.permute.xlu0 %640
  %644 = vset.pattern.permute.xlu0 0
  %645 = vperm.xlu0 %644, %v86
  %v646 = vpop.permute.xlu0 %645
  %649 = vset.pattern.permute.xlu0 0
  %650 = vperm.xlu0 %649, %v87
  %v651 = vpop.permute.xlu0 %650
  %654 = vset.pattern.permute.xlu0 0
  %655 = vperm.xlu0 %654, %v88
  %v656 = vpop.permute.xlu0 %655
  %659 = vset.pattern.permute.xlu0 0
  %660 = vperm.xlu0 %659, %v89
  %v661 = vpop.permute.xlu0 %660
  %664 = vset.pattern.permute.xlu0 0
  %665 = vperm.xlu0 %664, %v90
  %v666 = vpop.permute.xlu0 %665
  %669 = vset.pattern.permute.xlu0 0
  %670 = vperm.xlu0 %669, %v91
  %v671 = vpop.permute.xlu0 %670
  %674 = vset.pattern.permute.xlu0 0
  %675 = vperm.xlu0 %674, %v92
  %v676 = vpop.permute.xlu0 %675
  %679 = vset.pattern.permute.xlu0 0
  %680 = vperm.xlu0 %679, %v93
  %v681 = vpop.permute.xlu0 %680
  %684 = vset.pattern.permute.xlu0 0
  %685 = vperm.xlu0 %684, %v94
  %v686 = vpop.permute.xlu0 %685
  %689 = vset.pattern.permute.xlu0 0
  %690 = vperm.xlu0 %689, %v95
  %v691 = vpop.permute.xlu0 %690
  %694 = vset.pattern.permute.xlu0 0
  %695 = vperm.xlu0 %694, %v96
  %v696 = vpop.permute.xlu0 %695
  %699 = vset.pattern.permute.xlu0 0
  %700 = vperm.xlu0 %699, %v97
  %v701 = vpop.permute.xlu0 %700
  %704 = vset.pattern.permute.xlu0 0
  %705 = vperm.xlu0 %704, %v98
  %v706 = vpop.permute.xlu0 %705
  %709 = vset.pattern.permute.xlu0 0
  %710 = vperm.xlu0 %709, %v99
  %v711 = vpop.permute.xlu0 %710
  %714 = vset.pattern.permute.xlu0 0
  %715 = vperm.xlu0 %714, %v100
  %v716 = vpop.permute.xlu0 %715
  %719 = vset.pattern.permute.xlu0 0
  %720 = vperm.xlu0 %719, %v101
  %v721 = vpop.permute.xlu0 %720
  %724 = vset.pattern.permute.xlu0 0
  %725 = vperm.xlu0 %724, %v102
  %v726 = vpop.permute.xlu0 %725
  %729 = vset.pattern.permute.xlu0 0
  %730 = vperm.xlu0 %729, %v103
  %v731 = vpop.permute.xlu0 %730
  %734 = vset.pattern.permute.xlu0 0
  %735 = vperm.xlu0 %734, %v104
  %v736 = vpop.permute.xlu0 %735
  %739 = vset.pattern.permute.xlu0 0
  %740 = vperm.xlu0 %739, %v105
  %v741 = vpop.permute.xlu0 %740
  %744 = vset.pattern.permute.xlu0 0
  %745 = vperm.xlu0 %744, %v106
  %v746 = vpop.permute.xlu0 %745
  %749 = vset.pattern.permute.xlu0 0
  %750 = vperm.xlu0 %749, %v107
  %v751 = vpop.permute.xlu0 %750
  %754 = vset.pattern.permute.xlu0 0
  %755 = vperm.xlu0 %754, %v108
  %v756 = vpop.permute.xlu0 %755
  %759 = vset.pattern.permute.xlu0 0
  %760 = vperm.xlu0 %759, %v109
  %v761 = vpop.permute.xlu0 %760
  %764 = vset.pattern.permute.xlu0 0
  %765 = vperm.xlu0 %764, %v110
  %v766 = vpop.permute.xlu0 %765
  %769 = vset.pattern.permute.xlu0 0
  %770 = vperm.xlu0 %769, %v111
  %v771 = vpop.permute.xlu0 %770
  %774 = vset.pattern.permute.xlu0 0
  %775 = vperm.xlu0 %774, %v112
  %v776 = vpop.permute.xlu0 %775
  %779 = vset.pattern.permute.xlu0 0
  %780 = vperm.xlu0 %779, %v113
  %v781 = vpop.permute.xlu0 %780
  %784 = vset.pattern.permute.xlu0 0
  %785 = vperm.xlu0 %784, %v114
  %v786 = vpop.permute.xlu0 %785
  %789 = vset.pattern.permute.xlu0 0
  %790 = vperm.xlu0 %789, %v115
  %v791 = vpop.permute.xlu0 %790
  %794 = vset.pattern.permute.xlu0 0
  %795 = vperm.xlu0 %794, %v116
  %v796 = vpop.permute.xlu0 %795
  %799 = vset.pattern.permute.xlu0 0
  %800 = vperm.xlu0 %799, %v117
  %v801 = vpop.permute.xlu0 %800
  %804 = vset.pattern.permute.xlu0 0
  %805 = vperm.xlu0 %804, %v118
  %v806 = vpop.permute.xlu0 %805
  %809 = vset.pattern.permute.xlu0 0
  %810 = vperm.xlu0 %809, %v119
  %v811 = vpop.permute.xlu0 %810
  %814 = vset.pattern.permute.xlu0 0
  %815 = vperm.xlu0 %814, %v120
  %v816 = vpop.permute.xlu0 %815
  %819 = vset.pattern.permute.xlu0 0
  %820 = vperm.xlu0 %819, %v121
  %v821 = vpop.permute.xlu0 %820
  %824 = vset.pattern.permute.xlu0 0
  %825 = vperm.xlu0 %824, %v122
  %v826 = vpop.permute.xlu0 %825
  %829 = vset.pattern.permute.xlu0 0
  %830 = vperm.xlu0 %829, %v123
  %v831 = vpop.permute.xlu0 %830
  %834 = vset.pattern.permute.xlu0 0
  %835 = vperm.xlu0 %834, %v124
  %v836 = vpop.permute.xlu0 %835
  %839 = vset.pattern.permute.xlu0 0
  %840 = vperm.xlu0 %839, %v125
  %v841 = vpop.permute.xlu0 %840
  %844 = vset.pattern.permute.xlu0 0
  %845 = vperm.xlu0 %844, %v126
  %v846 = vpop.permute.xlu0 %845
  %849 = vset.pattern.permute.xlu0 0
  %850 = vperm.xlu0 %849, %v127
  %v851 = vpop.permute.xlu0 %850
  %854 = vset.pattern.permute.xlu0 0
  %855 = vperm.xlu0 %854, %v128
  %v856 = vpop.permute.xlu0 %855
  %859 = vset.pattern.permute.xlu0 0
  %860 = vperm.xlu0 %859, %v129
  %v861 = vpop.permute.xlu0 %860
  %864 = vset.pattern.permute.xlu0 0
  %865 = vperm.xlu0 %864, %v130
  %v866 = vpop.permute.xlu0 %865
  %869 = vset.pattern.permute.xlu0 0
  %870 = vperm.xlu0 %869, %v131
  %v871 = vpop.permute.xlu0 %870
  %874 = vset.pattern.permute.xlu0 0
  %875 = vperm.xlu0 %874, %v132
  %v876 = vpop.permute.xlu0 %875
  %879 = vset.pattern.permute.xlu0 0
  %880 = vperm.xlu0 %879, %v133
  %v881 = vpop.permute.xlu0 %880
  %884 = vset.pattern.permute.xlu0 0
  %885 = vperm.xlu0 %884, %v134
  %v886 = vpop.permute.xlu0 %885
  %889 = vset.pattern.permute.xlu0 0
  %890 = vperm.xlu0 %889, %v135
  %v891 = vpop.permute.xlu0 %890
  %894 = vset.pattern.permute.xlu0 0
  %895 = vperm.xlu0 %894, %v136
  %v896 = vpop.permute.xlu0 %895
  %899 = vset.pattern.permute.xlu0 0
  %900 = vperm.xlu0 %899, %v137
  %v901 = vpop.permute.xlu0 %900
  %904 = vset.pattern.permute.xlu0 0
  %905 = vperm.xlu0 %904, %v138
  %v906 = vpop.permute.xlu0 %905
  %909 = vset.pattern.permute.xlu0 0
  %910 = vperm.xlu0 %909, %v139
  %v911 = vpop.permute.xlu0 %910
  %914 = vset.pattern.permute.xlu0 0
  %915 = vperm.xlu0 %914, %v140
  %v916 = vpop.permute.xlu0 %915
  %919 = vset.pattern.permute.xlu0 0
  %920 = vperm.xlu0 %919, %v141
  %v921 = vpop.permute.xlu0 %920
  %924 = vset.pattern.permute.xlu0 0
  %925 = vperm.xlu0 %924, %v142
  %v926 = vpop.permute.xlu0 %925
  %929 = vset.pattern.permute.xlu0 0
  %930 = vperm.xlu0 %929, %v143
  %v931 = vpop.permute.xlu0 %930
  %934 = vset.pattern.permute.xlu0 0
  %935 = vperm.xlu0 %934, %v144
  %v936 = vpop.permute.xlu0 %935
  %939 = vset.pattern.permute.xlu0 0
  %940 = vperm.xlu0 %939, %v145
  %v941 = vpop.permute.xlu0 %940
  %944 = vset.pattern.permute.xlu0 0
  %945 = vperm.xlu0 %944, %v146
  %v946 = vpop.permute.xlu0 %945
  %949 = vset.pattern.permute.xlu0 0
  %950 = vperm.xlu0 %949, %v147
  %v951 = vpop.permute.xlu0 %950
  %954 = vset.pattern.permute.xlu0 0
  %955 = vperm.xlu0 %954, %v148
  %v956 = vpop.permute.xlu0 %955
  %959 = vset.pattern.permute.xlu0 0
  %960 = vperm.xlu0 %959, %v149
  %v961 = vpop.permute.xlu0 %960
  %964 = vset.pattern.permute.xlu0 0
  %965 = vperm.xlu0 %964, %v150
  %v966 = vpop.permute.xlu0 %965
  %969 = vset.pattern.permute.xlu0 0
  %970 = vperm.xlu0 %969, %v151
  %v971 = vpop.permute.xlu0 %970
  %974 = vset.pattern.permute.xlu0 0
  %975 = vperm.xlu0 %974, %v152
  %v976 = vpop.permute.xlu0 %975
  %979 = vset.pattern.permute.xlu0 0
  %980 = vperm.xlu0 %979, %v153
  %v981 = vpop.permute.xlu0 %980
  %984 = vset.pattern.permute.xlu0 0
  %985 = vperm.xlu0 %984, %v154
  %v986 = vpop.permute.xlu0 %985
  %989 = vset.pattern.permute.xlu0 0
  %990 = vperm.xlu0 %989, %v155
  %v991 = vpop.permute.xlu0 %990
  %994 = vset.pattern.permute.xlu0 0
  %995 = vperm.xlu0 %994, %v156
  %v996 = vpop.permute.xlu0 %995
  %999 = vset.pattern.permute.xlu0 0
  %1000 = vperm.xlu0 %999, %v157
  %v1001 = vpop.permute.xlu0 %1000
  %1004 = vset.pattern.permute.xlu0 0
  %1005 = vperm.xlu0 %1004, %v158
  %v1006 = vpop.permute.xlu0 %1005
  %1009 = vset.pattern.permute.xlu0 0
  %1010 = vperm.xlu0 %1009, %v159
  %v1011 = vpop.permute.xlu0 %1010
  %1014 = vset.pattern.permute.xlu0 0
  %1015 = vperm.xlu0 %1014, %v160
  %v1016 = vpop.permute.xlu0 %1015
  %1019 = vset.pattern.permute.xlu0 0
  %1020 = vperm.xlu0 %1019, %v161
  %v1021 = vpop.permute.xlu0 %1020
  %1024 = vset.pattern.permute.xlu0 0
  %1025 = vperm.xlu0 %1024, %v162
  %v1026 = vpop.permute.xlu0 %1025
  %1029 = vset.pattern.permute.xlu0 0
  %1030 = vperm.xlu0 %1029, %v163
  %v1031 = vpop.permute.xlu0 %1030
  %1034 = vset.pattern.permute.xlu0 0
  %1035 = vperm.xlu0 %1034, %v164
  %v1036 = vpop.permute.xlu0 %1035
  %1039 = vset.pattern.permute.xlu0 0
  %1040 = vperm.xlu0 %1039, %v165
  %v1041 = vpop.permute.xlu0 %1040
  %1044 = vset.pattern.permute.xlu0 0
  %1045 = vperm.xlu0 %1044, %v166
  %v1046 = vpop.permute.xlu0 %1045
  %1049 = vset.pattern.permute.xlu0 0
  %1050 = vperm.xlu0 %1049, %v167
  %v1051 = vpop.permute.xlu0 %1050
  %1054 = vset.pattern.permute.xlu0 0
  %1055 = vperm.xlu0 %1054, %v168
  %v1056 = vpop.permute.xlu0 %1055
  %1059 = vset.pattern.permute.xlu0 0
  %1060 = vperm.xlu0 %1059, %v169
  %v1061 = vpop.permute.xlu0 %1060
  %1064 = vset.pattern.permute.xlu0 0
  %1065 = vperm.xlu0 %1064, %v170
  %v1066 = vpop.permute.xlu0 %1065
  %1069 = vset.pattern.permute.xlu0 0
  %1070 = vperm.xlu0 %1069, %v171
  %v1071 = vpop.permute.xlu0 %1070
  %1074 = vset.pattern.permute.xlu0 0
  %1075 = vperm.xlu0 %1074, %v172
  %v1076 = vpop.permute.xlu0 %1075
  %1079 = vset.pattern.permute.xlu0 0
  %1080 = vperm.xlu0 %1079, %v173
  %v1081 = vpop.permute.xlu0 %1080
  %1084 = vset.pattern.permute.xlu0 0
  %1085 = vperm.xlu0 %1084, %v174
  %v1086 = vpop.permute.xlu0 %1085
  %1089 = vset.pattern.permute.xlu0 0
  %1090 = vperm.xlu0 %1089, %v175
  %v1091 = vpop.permute.xlu0 %1090
  %1094 = vset.pattern.permute.xlu0 0
  %1095 = vperm.xlu0 %1094, %v176
  %v1096 = vpop.permute.xlu0 %1095
  %1099 = vset.pattern.permute.xlu0 0
  %1100 = vperm.xlu0 %1099, %v177
  %v1101 = vpop.permute.xlu0 %1100
  %1104 = vset.pattern.permute.xlu0 0
  %1105 = vperm.xlu0 %1104, %v178
  %v1106 = vpop.permute.xlu0 %1105
  %1109 = vset.pattern.permute.xlu0 0
  %1110 = vperm.xlu0 %1109, %v179
  %v1111 = vpop.permute.xlu0 %1110
  %1114 = vset.pattern.permute.xlu0 0
  %1115 = vperm.xlu0 %1114, %v180
  %v1116 = vpop.permute.xlu0 %1115
  %1119 = vset.pattern.permute.xlu0 0
  %1120 = vperm.xlu0 %1119, %v181
  %v1121 = vpop.permute.xlu0 %1120
  %1124 = vset.pattern.permute.xlu0 0
  %1125 = vperm.xlu0 %1124, %v182
  %v1126 = vpop.permute.xlu0 %1125
  %1129 = vset.pattern.permute.xlu0 0
  %1130 = vperm.xlu0 %1129, %v183
  %v1131 = vpop.permute.xlu0 %1130
  %1134 = vset.pattern.permute.xlu0 0
  %1135 = vperm.xlu0 %1134, %v184
  %v1136 = vpop.permute.xlu0 %1135
  %1139 = vset.pattern.permute.xlu0 0
  %1140 = vperm.xlu0 %1139, %v185
  %v1141 = vpop.permute.xlu0 %1140
  %1144 = vset.pattern.permute.xlu0 0
  %1145 = vperm.xlu0 %1144, %v186
  %v1146 = vpop.permute.xlu0 %1145
  %1149 = vset.pattern.permute.xlu0 0
  %1150 = vperm.xlu0 %1149, %v187
  %v1151 = vpop.permute.xlu0 %1150
  %1154 = vset.pattern.permute.xlu0 0
  %1155 = vperm.xlu0 %1154, %v188
  %v1156 = vpop.permute.xlu0 %1155
  %1159 = vset.pattern.permute.xlu0 0
  %1160 = vperm.xlu0 %1159, %v189
  %v1161 = vpop.permute.xlu0 %1160
  %1164 = vset.pattern.permute.xlu0 0
  %1165 = vperm.xlu0 %1164, %v190
  %v1166 = vpop.permute.xlu0 %1165
  %1169 = vset.pattern.permute.xlu0 0
  %1170 = vperm.xlu0 %1169, %v191
  %v1171 = vpop.permute.xlu0 %1170
  %1174 = vset.pattern.permute.xlu0 0
  %1175 = vperm.xlu0 %1174, %v192
  %v1176 = vpop.permute.xlu0 %1175
  %1179 = vset.pattern.permute.xlu0 0
  %1180 = vperm.xlu0 %1179, %v193
  %v1181 = vpop.permute.xlu0 %1180
  %1184 = vset.pattern.permute.xlu0 0
  %1185 = vperm.xlu0 %1184, %v194
  %v1186 = vpop.permute.xlu0 %1185
  %1189 = vset.pattern.permute.xlu0 0
  %1190 = vperm.xlu0 %1189, %v195
  %v1191 = vpop.permute.xlu0 %1190
  %1194 = vset.pattern.permute.xlu0 0
  %1195 = vperm.xlu0 %1194, %v196
  %v1196 = vpop.permute.xlu0 %1195
  %1199 = vset.pattern.permute.xlu0 0
  %1200 = vperm.xlu0 %1199, %v197
  %v1201 = vpop.permute.xlu0 %1200
  %1204 = vset.pattern.permute.xlu0 0
  %1205 = vperm.xlu0 %1204, %v198
  %v1206 = vpop.permute.xlu0 %1205
  %1209 = vset.pattern.permute.xlu0 0
  %1210 = vperm.xlu0 %1209, %v199
  %v1211 = vpop.permute.xlu0 %1210
  %1214 = vset.pattern.permute.xlu0 0
  %1215 = vperm.xlu0 %1214, %v200
  %v1216 = vpop.permute.xlu0 %1215
  %1219 = vset.pattern.permute.xlu0 0
  %1220 = vperm.xlu0 %1219, %v201
  %v1221 = vpop.permute.xlu0 %1220
  %1224 = vset.pattern.permute.xlu0 0
  %1225 = vperm.xlu0 %1224, %v202
  %v1226 = vpop.permute.xlu0 %1225
  %1229 = vset.pattern.permute.xlu0 0
  %1230 = vperm.xlu0 %1229, %v203
  %v1231 = vpop.permute.xlu0 %1230
  %1234 = vset.pattern.permute.xlu0 0
  %1235 = vperm.xlu0 %1234, %v204
  %v1236 = vpop.permute.xlu0 %1235
  %1239 = vset.pattern.permute.xlu0 0
  %1240 = vperm.xlu0 %1239, %v205
  %v1241 = vpop.permute.xlu0 %1240
  %1244 = vset.pattern.permute.xlu0 0
  %1245 = vperm.xlu0 %1244, %v206
  %v1246 = vpop.permute.xlu0 %1245
  %1249 = vset.pattern.permute.xlu0 0
  %1250 = vperm.xlu0 %1249, %v207
  %v1251 = vpop.permute.xlu0 %1250
  %1254 = vset.pattern.permute.xlu0 0
  %1255 = vperm.xlu0 %1254, %v208
  %v1256 = vpop.permute.xlu0 %1255
  %1259 = vset.pattern.permute.xlu0 0
  %1260 = vperm.xlu0 %1259, %v209
  %v1261 = vpop.permute.xlu0 %1260
  %1264 = vset.pattern.permute.xlu0 0
  %1265 = vperm.xlu0 %1264, %v210
  %v1266 = vpop.permute.xlu0 %1265
  %1269 = vset.pattern.permute.xlu0 0
  %1270 = vperm.xlu0 %1269, %v211
  %v1271 = vpop.permute.xlu0 %1270
  %1274 = vset.pattern.permute.xlu0 0
  %1275 = vperm.xlu0 %1274, %v212
  %v1276 = vpop.permute.xlu0 %1275
  %1279 = vset.pattern.permute.xlu0 0
  %1280 = vperm.xlu0 %1279, %v213
  %v1281 = vpop.permute.xlu0 %1280
  %1284 = vset.pattern.permute.xlu0 0
  %1285 = vperm.xlu0 %1284, %v214
  %v1286 = vpop.permute.xlu0 %1285
  %1289 = vset.pattern.permute.xlu0 0
  %1290 = vperm.xlu0 %1289, %v215
  %v1291 = vpop.permute.xlu0 %1290
  %1294 = vset.pattern.permute.xlu0 0
  %1295 = vperm.xlu0 %1294, %v216
  %v1296 = vpop.permute.xlu0 %1295
  %1299 = vset.pattern.permute.xlu0 0
  %1300 = vperm.xlu0 %1299, %v217
  %v1301 = vpop.permute.xlu0 %1300
  %1304 = vset.pattern.permute.xlu0 0
  %1305 = vperm.xlu0 %1304, %v218
  %v1306 = vpop.permute.xlu0 %1305
  %1309 = vset.pattern.permute.xlu0 0
  %1310 = vperm.xlu0 %1309, %v219
  %v1311 = vpop.permute.xlu0 %1310
  %1314 = vset.pattern.permute.xlu0 0
  %1315 = vperm.xlu0 %1314, %v220
  %v1316 = vpop.permute.xlu0 %1315
  %1319 = vset.pattern.permute.xlu0 0
  %1320 = vperm.xlu0 %1319, %v221
  %v1321 = vpop.permute.xlu0 %1320
  %1324 = vset.pattern.permute.xlu0 0
  %1325 = vperm.xlu0 %1324, %v222
  %v1326 = vpop.permute.xlu0 %1325
  %1329 = vset.pattern.permute.xlu0 0
  %1330 = vperm.xlu0 %1329, %v223
  %v1331 = vpop.permute.xlu0 %1330
  %1334 = vset.pattern.permute.xlu0 0
  %1335 = vperm.xlu0 %1334, %v224
  %v1336 = vpop.permute.xlu0 %1335
  %1339 = vset.pattern.permute.xlu0 0
  %1340 = vperm.xlu0 %1339, %v225
  %v1341 = vpop.permute.xlu0 %1340
  %1344 = vset.pattern.permute.xlu0 0
  %1345 = vperm.xlu0 %1344, %v226
  %v1346 = vpop.permute.xlu0 %1345
  %1349 = vset.pattern.permute.xlu0 0
  %1350 = vperm.xlu0 %1349, %v227
  %v1351 = vpop.permute.xlu0 %1350
  %1354 = vset.pattern.permute.xlu0 0
  %1355 = vperm.xlu0 %1354, %v228
  %v1356 = vpop.permute.xlu0 %1355
  %1359 = vset.pattern.permute.xlu0 0
  %1360 = vperm.xlu0 %1359, %v229
  %v1361 = vpop.permute.xlu0 %1360
  %1364 = vset.pattern.permute.xlu0 0
  %1365 = vperm.xlu0 %1364, %v230
  %v1366 = vpop.permute.xlu0 %1365
  %1369 = vset.pattern.permute.xlu0 0
  %1370 = vperm.xlu0 %1369, %v231
  %v1371 = vpop.permute.xlu0 %1370
  %1374 = vset.pattern.permute.xlu0 0
  %1375 = vperm.xlu0 %1374, %v232
  %v1376 = vpop.permute.xlu0 %1375
  %1379 = vset.pattern.permute.xlu0 0
  %1380 = vperm.xlu0 %1379, %v233
  %v1381 = vpop.permute.xlu0 %1380
  %1384 = vset.pattern.permute.xlu0 0
  %1385 = vperm.xlu0 %1384, %v234
  %v1386 = vpop.permute.xlu0 %1385
  %1389 = vset.pattern.permute.xlu0 0
  %1390 = vperm.xlu0 %1389, %v235
  %v1391 = vpop.permute.xlu0 %1390
  %1394 = vset.pattern.permute.xlu0 0
  %1395 = vperm.xlu0 %1394, %v236
  %v1396 = vpop.permute.xlu0 %1395
  %1399 = vset.pattern.permute.xlu0 0
  %1400 = vperm.xlu0 %1399, %v237
  %v1401 = vpop.permute.xlu0 %1400
  %1404 = vset.pattern.permute.xlu0 0
  %1405 = vperm.xlu0 %1404, %v238
  %v1406 = vpop.permute.xlu0 %1405
  %1409 = vset.pattern.permute.xlu0 0
  %1410 = vperm.xlu0 %1409, %v239
  %v1411 = vpop.permute.xlu0 %1410
  %1414 = vset.pattern.permute.xlu0 0
  %1415 = vperm.xlu0 %1414, %v240
  %v1416 = vpop.permute.xlu0 %1415
  %1419 = vset.pattern.permute.xlu0 0
  %1420 = vperm.xlu0 %1419, %v241
  %v1421 = vpop.permute.xlu0 %1420
  %1424 = vset.pattern.permute.xlu0 0
  %1425 = vperm.xlu0 %1424, %v242
  %v1426 = vpop.permute.xlu0 %1425
  %1429 = vset.pattern.permute.xlu0 0
  %1430 = vperm.xlu0 %1429, %v243
  %v1431 = vpop.permute.xlu0 %1430
  %1434 = vset.pattern.permute.xlu0 0
  %1435 = vperm.xlu0 %1434, %v244
  %v1436 = vpop.permute.xlu0 %1435
  %1439 = vset.pattern.permute.xlu0 0
  %1440 = vperm.xlu0 %1439, %v245
  %v1441 = vpop.permute.xlu0 %1440
  %1444 = vset.pattern.permute.xlu0 0
  %1445 = vperm.xlu0 %1444, %v246
  %v1446 = vpop.permute.xlu0 %1445
  %1449 = vset.pattern.permute.xlu0 0
  %1450 = vperm.xlu0 %1449, %v247
  %v1451 = vpop.permute.xlu0 %1450
  %1454 = vset.pattern.permute.xlu0 0
  %1455 = vperm.xlu0 %1454, %v248
  %v1456 = vpop.permute.xlu0 %1455
  %1459 = vset.pattern.permute.xlu0 0
  %1460 = vperm.xlu0 %1459, %v249
  %v1461 = vpop.permute.xlu0 %1460
  %1464 = vset.pattern.permute.xlu0 0
  %1465 = vperm.xlu0 %1464, %v250
  %v1466 = vpop.permute.xlu0 %1465
  %1469 = vset.pattern.permute.xlu0 0
  %1470 = vperm.xlu0 %1469, %v251
  %v1471 = vpop.permute.xlu0 %1470
  %1474 = vset.pattern.permute.xlu0 0
  %1475 = vperm.xlu0 %1474, %v252
  %v1476 = vpop.permute.xlu0 %1475
  %1479 = vset.pattern.permute.xlu0 0
  %1480 = vperm.xlu0 %1479, %v253
  %v1481 = vpop.permute.xlu0 %1480
  %1484 = vset.pattern.permute.xlu0 0
  %1485 = vperm.xlu0 %1484, %v254
  %v1486 = vpop.permute.xlu0 %1485
  %1489 = vset.pattern.permute.xlu0 0
  %1490 = vperm.xlu0 %1489, %v255
  %v1491 = vpop.permute.xlu0 %1490
  %1494 = vset.pattern.permute.xlu0 0
  %1495 = vperm.xlu0 %1494, %v256
  %v1496 = vpop.permute.xlu0 %1495
  %1499 = vset.pattern.permute.xlu0 0
  %1500 = vperm.xlu0 %1499, %v257
  %v1501 = vpop.permute.xlu0 %1500
  %1504 = vset.pattern.permute.xlu0 0
  %1505 = vperm.xlu0 %1504, %v258
  %v1506 = vpop.permute.xlu0 %1505
  %1509 = vset.pattern.permute.xlu0 0
  %1510 = vperm.xlu0 %1509, %v259
  %v1511 = vpop.permute.xlu0 %1510
  %1514 = vset.pattern.permute.xlu0 0
  %1515 = vperm.xlu0 %1514, %v260
  %v1516 = vpop.permute.xlu0 %1515
  %1519 = vset.pattern.permute.xlu0 0
  %1520 = vperm.xlu0 %1519, %v261
  %v1521 = vpop.permute.xlu0 %1520
  %1524 = vset.pattern.permute.xlu0 0
  %1525 = vperm.xlu0 %1524, %v262
  %v1526 = vpop.permute.xlu0 %1525
  %1529 = vset.pattern.permute.xlu0 0
  %1530 = vperm.xlu0 %1529, %v263
  %v1531 = vpop.permute.xlu0 %1530
  %1534 = vset.pattern.permute.xlu0 0
  %1535 = vperm.xlu0 %1534, %v264
  %v1536 = vpop.permute.xlu0 %1535
  %1539 = vset.pattern.permute.xlu0 0
  %1540 = vperm.xlu0 %1539, %v265
  %v1541 = vpop.permute.xlu0 %1540
  %1544 = vset.pattern.permute.xlu0 0
  %1545 = vperm.xlu0 %1544, %v266
  %v1546 = vpop.permute.xlu0 %1545
  %v1549 = vlaneseq
  %v1550 = vshrl.u32 %v1549, 7
  %v1551 = vsub.s32 0, %v1550
  %v1552 = vrot.slane %v267, %v1551
  %v1554 = vsub.f32 %v271, %v1552
  %v1555 = vsub.f32 %v276, %v1552
  %v1556 = vsub.f32 %v281, %v1552
  %v1557 = vsub.f32 %v286, %v1552
  %v1558 = vsub.f32 %v291, %v1552
  %v1559 = vsub.f32 %v296, %v1552
  %v1560 = vsub.f32 %v301, %v1552
  %v1561 = vsub.f32 %v306, %v1552
  %v1562 = vsub.f32 %v311, %v1552
  %v1563 = vsub.f32 %v316, %v1552
  %v1564 = vsub.f32 %v321, %v1552
  %v1565 = vsub.f32 %v326, %v1552
  %v1566 = vsub.f32 %v331, %v1552
  %v1567 = vsub.f32 %v336, %v1552
  %v1568 = vsub.f32 %v341, %v1552
  %v1569 = vsub.f32 %v346, %v1552
  %v1570 = vsub.f32 %v351, %v1552
  %v1571 = vsub.f32 %v356, %v1552
  %v1572 = vsub.f32 %v361, %v1552
  %v1573 = vsub.f32 %v366, %v1552
  %v1574 = vsub.f32 %v371, %v1552
  %v1575 = vsub.f32 %v376, %v1552
  %v1576 = vsub.f32 %v381, %v1552
  %v1577 = vsub.f32 %v386, %v1552
  %v1578 = vsub.f32 %v391, %v1552
  %v1579 = vsub.f32 %v396, %v1552
  %v1580 = vsub.f32 %v401, %v1552
  %v1581 = vsub.f32 %v406, %v1552
  %v1582 = vsub.f32 %v411, %v1552
  %v1583 = vsub.f32 %v416, %v1552
  %v1584 = vsub.f32 %v421, %v1552
  %v1585 = vsub.f32 %v426, %v1552
  %v1586 = vsub.f32 %v431, %v1552
  %v1587 = vsub.f32 %v436, %v1552
  %v1588 = vsub.f32 %v441, %v1552
  %v1589 = vsub.f32 %v446, %v1552
  %v1590 = vsub.f32 %v451, %v1552
  %v1591 = vsub.f32 %v456, %v1552
  %v1592 = vsub.f32 %v461, %v1552
  %v1593 = vsub.f32 %v466, %v1552
  %v1594 = vsub.f32 %v471, %v1552
  %v1595 = vsub.f32 %v476, %v1552
  %v1596 = vsub.f32 %v481, %v1552
  %v1597 = vsub.f32 %v486, %v1552
  %v1598 = vsub.f32 %v491, %v1552
  %v1599 = vsub.f32 %v496, %v1552
  %v1600 = vsub.f32 %v501, %v1552
  %v1601 = vsub.f32 %v506, %v1552
  %v1602 = vsub.f32 %v511, %v1552
  %v1603 = vsub.f32 %v516, %v1552
  %v1604 = vsub.f32 %v521, %v1552
  %v1605 = vsub.f32 %v526, %v1552
  %v1606 = vsub.f32 %v531, %v1552
  %v1607 = vsub.f32 %v536, %v1552
  %v1608 = vsub.f32 %v541, %v1552
  %v1609 = vsub.f32 %v546, %v1552
  %v1610 = vsub.f32 %v551, %v1552
  %v1611 = vsub.f32 %v556, %v1552
  %v1612 = vsub.f32 %v561, %v1552
  %v1613 = vsub.f32 %v566, %v1552
  %v1614 = vsub.f32 %v571, %v1552
  %v1615 = vsub.f32 %v576, %v1552
  %v1616 = vsub.f32 %v581, %v1552
  %v1617 = vsub.f32 %v586, %v1552
  %v1618 = vsub.f32 %v591, %v1552
  %v1619 = vsub.f32 %v596, %v1552
  %v1620 = vsub.f32 %v601, %v1552
  %v1621 = vsub.f32 %v606, %v1552
  %v1622 = vsub.f32 %v611, %v1552
  %v1623 = vsub.f32 %v616, %v1552
  %v1624 = vsub.f32 %v621, %v1552
  %v1625 = vsub.f32 %v626, %v1552
  %v1626 = vsub.f32 %v631, %v1552
  %v1627 = vsub.f32 %v636, %v1552
  %v1628 = vsub.f32 %v641, %v1552
  %v1629 = vsub.f32 %v646, %v1552
  %v1630 = vsub.f32 %v651, %v1552
  %v1631 = vsub.f32 %v656, %v1552
  %v1632 = vsub.f32 %v661, %v1552
  %v1633 = vsub.f32 %v666, %v1552
  %v1634 = vsub.f32 %v671, %v1552
  %v1635 = vsub.f32 %v676, %v1552
  %v1636 = vsub.f32 %v681, %v1552
  %v1637 = vsub.f32 %v686, %v1552
  %v1638 = vsub.f32 %v691, %v1552
  %v1639 = vsub.f32 %v696, %v1552
  %v1640 = vsub.f32 %v701, %v1552
  %v1641 = vsub.f32 %v706, %v1552
  %v1642 = vsub.f32 %v711, %v1552
  %v1643 = vsub.f32 %v716, %v1552
  %v1644 = vsub.f32 %v721, %v1552
  %v1645 = vsub.f32 %v726, %v1552
  %v1646 = vsub.f32 %v731, %v1552
  %v1647 = vsub.f32 %v736, %v1552
  %v1648 = vsub.f32 %v741, %v1552
  %v1649 = vsub.f32 %v746, %v1552
  %v1650 = vsub.f32 %v751, %v1552
  %v1651 = vsub.f32 %v756, %v1552
  %v1652 = vsub.f32 %v761, %v1552
  %v1653 = vsub.f32 %v766, %v1552
  %v1654 = vsub.f32 %v771, %v1552
  %v1655 = vsub.f32 %v776, %v1552
  %v1656 = vsub.f32 %v781, %v1552
  %v1657 = vsub.f32 %v786, %v1552
  %v1658 = vsub.f32 %v791, %v1552
  %v1659 = vsub.f32 %v796, %v1552
  %v1660 = vsub.f32 %v801, %v1552
  %v1661 = vsub.f32 %v806, %v1552
  %v1662 = vsub.f32 %v811, %v1552
  %v1663 = vsub.f32 %v816, %v1552
  %v1664 = vsub.f32 %v821, %v1552
  %v1665 = vsub.f32 %v826, %v1552
  %v1666 = vsub.f32 %v831, %v1552
  %v1667 = vsub.f32 %v836, %v1552
  %v1668 = vsub.f32 %v841, %v1552
  %v1669 = vsub.f32 %v846, %v1552
  %v1670 = vsub.f32 %v851, %v1552
  %v1671 = vsub.f32 %v856, %v1552
  %v1672 = vsub.f32 %v861, %v1552
  %v1673 = vsub.f32 %v866, %v1552
  %v1674 = vsub.f32 %v871, %v1552
  %v1675 = vsub.f32 %v876, %v1552
  %v1676 = vsub.f32 %v881, %v1552
  %v1677 = vsub.f32 %v886, %v1552
  %v1678 = vsub.f32 %v891, %v1552
  %v1679 = vsub.f32 %v896, %v1552
  %v1680 = vsub.f32 %v901, %v1552
  %v1681 = vsub.f32 %v906, %v1552
  %v1682 = vsub.f32 %v911, %v1552
  %v1683 = vsub.f32 %v916, %v1552
  %v1684 = vsub.f32 %v921, %v1552
  %v1685 = vsub.f32 %v926, %v1552
  %v1686 = vsub.f32 %v931, %v1552
  %v1687 = vsub.f32 %v936, %v1552
  %v1688 = vsub.f32 %v941, %v1552
  %v1689 = vsub.f32 %v946, %v1552
  %v1690 = vsub.f32 %v951, %v1552
  %v1691 = vsub.f32 %v956, %v1552
  %v1692 = vsub.f32 %v961, %v1552
  %v1693 = vsub.f32 %v966, %v1552
  %v1694 = vsub.f32 %v971, %v1552
  %v1695 = vsub.f32 %v976, %v1552
  %v1696 = vsub.f32 %v981, %v1552
  %v1697 = vsub.f32 %v986, %v1552
  %v1698 = vsub.f32 %v991, %v1552
  %v1699 = vsub.f32 %v996, %v1552
  %v1700 = vsub.f32 %v1001, %v1552
  %v1701 = vsub.f32 %v1006, %v1552
  %v1702 = vsub.f32 %v1011, %v1552
  %v1703 = vsub.f32 %v1016, %v1552
  %v1704 = vsub.f32 %v1021, %v1552
  %v1705 = vsub.f32 %v1026, %v1552
  %v1706 = vsub.f32 %v1031, %v1552
  %v1707 = vsub.f32 %v1036, %v1552
  %v1708 = vsub.f32 %v1041, %v1552
  %v1709 = vsub.f32 %v1046, %v1552
  %v1710 = vsub.f32 %v1051, %v1552
  %v1711 = vsub.f32 %v1056, %v1552
  %v1712 = vsub.f32 %v1061, %v1552
  %v1713 = vsub.f32 %v1066, %v1552
  %v1714 = vsub.f32 %v1071, %v1552
  %v1715 = vsub.f32 %v1076, %v1552
  %v1716 = vsub.f32 %v1081, %v1552
  %v1717 = vsub.f32 %v1086, %v1552
  %v1718 = vsub.f32 %v1091, %v1552
  %v1719 = vsub.f32 %v1096, %v1552
  %v1720 = vsub.f32 %v1101, %v1552
  %v1721 = vsub.f32 %v1106, %v1552
  %v1722 = vsub.f32 %v1111, %v1552
  %v1723 = vsub.f32 %v1116, %v1552
  %v1724 = vsub.f32 %v1121, %v1552
  %v1725 = vsub.f32 %v1126, %v1552
  %v1726 = vsub.f32 %v1131, %v1552
  %v1727 = vsub.f32 %v1136, %v1552
  %v1728 = vsub.f32 %v1141, %v1552
  %v1729 = vsub.f32 %v1146, %v1552
  %v1730 = vsub.f32 %v1151, %v1552
  %v1731 = vsub.f32 %v1156, %v1552
  %v1732 = vsub.f32 %v1161, %v1552
  %v1733 = vsub.f32 %v1166, %v1552
  %v1734 = vsub.f32 %v1171, %v1552
  %v1735 = vsub.f32 %v1176, %v1552
  %v1736 = vsub.f32 %v1181, %v1552
  %v1737 = vsub.f32 %v1186, %v1552
  %v1738 = vsub.f32 %v1191, %v1552
  %v1739 = vsub.f32 %v1196, %v1552
  %v1740 = vsub.f32 %v1201, %v1552
  %v1741 = vsub.f32 %v1206, %v1552
  %v1742 = vsub.f32 %v1211, %v1552
  %v1743 = vsub.f32 %v1216, %v1552
  %v1744 = vsub.f32 %v1221, %v1552
  %v1745 = vsub.f32 %v1226, %v1552
  %v1746 = vsub.f32 %v1231, %v1552
  %v1747 = vsub.f32 %v1236, %v1552
  %v1748 = vsub.f32 %v1241, %v1552
  %v1749 = vsub.f32 %v1246, %v1552
  %v1750 = vsub.f32 %v1251, %v1552
  %v1751 = vsub.f32 %v1256, %v1552
  %v1752 = vsub.f32 %v1261, %v1552
  %v1753 = vsub.f32 %v1266, %v1552
  %v1754 = vsub.f32 %v1271, %v1552
  %v1755 = vsub.f32 %v1276, %v1552
  %v1756 = vsub.f32 %v1281, %v1552
  %v1757 = vsub.f32 %v1286, %v1552
  %v1758 = vsub.f32 %v1291, %v1552
  %v1759 = vsub.f32 %v1296, %v1552
  %v1760 = vsub.f32 %v1301, %v1552
  %v1761 = vsub.f32 %v1306, %v1552
  %v1762 = vsub.f32 %v1311, %v1552
  %v1763 = vsub.f32 %v1316, %v1552
  %v1764 = vsub.f32 %v1321, %v1552
  %v1765 = vsub.f32 %v1326, %v1552
  %v1766 = vsub.f32 %v1331, %v1552
  %v1767 = vsub.f32 %v1336, %v1552
  %v1768 = vsub.f32 %v1341, %v1552
  %v1769 = vsub.f32 %v1346, %v1552
  %v1770 = vsub.f32 %v1351, %v1552
  %v1771 = vsub.f32 %v1356, %v1552
  %v1772 = vsub.f32 %v1361, %v1552
  %v1773 = vsub.f32 %v1366, %v1552
  %v1774 = vsub.f32 %v1371, %v1552
  %v1775 = vsub.f32 %v1376, %v1552
  %v1776 = vsub.f32 %v1381, %v1552
  %v1777 = vsub.f32 %v1386, %v1552
  %v1778 = vsub.f32 %v1391, %v1552
  %v1779 = vsub.f32 %v1396, %v1552
  %v1780 = vsub.f32 %v1401, %v1552
  %v1781 = vsub.f32 %v1406, %v1552
  %v1782 = vsub.f32 %v1411, %v1552
  %v1783 = vsub.f32 %v1416, %v1552
  %v1784 = vsub.f32 %v1421, %v1552
  %v1785 = vsub.f32 %v1426, %v1552
  %v1786 = vsub.f32 %v1431, %v1552
  %v1787 = vsub.f32 %v1436, %v1552
  %v1788 = vsub.f32 %v1441, %v1552
  %v1789 = vsub.f32 %v1446, %v1552
  %v1790 = vsub.f32 %v1451, %v1552
  %v1791 = vsub.f32 %v1456, %v1552
  %v1792 = vsub.f32 %v1461, %v1552
  %v1793 = vsub.f32 %v1466, %v1552
  %v1794 = vsub.f32 %v1471, %v1552
  %v1795 = vsub.f32 %v1476, %v1552
  %v1796 = vsub.f32 %v1481, %v1552
  %v1797 = vsub.f32 %v1486, %v1552
  %v1798 = vsub.f32 %v1491, %v1552
  %v1799 = vsub.f32 %v1496, %v1552
  %v1800 = vsub.f32 %v1501, %v1552
  %v1801 = vsub.f32 %v1506, %v1552
  %v1802 = vsub.f32 %v1511, %v1552
  %v1803 = vsub.f32 %v1516, %v1552
  %v1804 = vsub.f32 %v1521, %v1552
  %v1805 = vsub.f32 %v1526, %v1552
  %v1806 = vsub.f32 %v1531, %v1552
  %v1807 = vsub.f32 %v1536, %v1552
  %v1808 = vsub.f32 %v1541, %v1552
  %v1809 = vsub.f32 %v1546, %v1552
  %v1810 = vmul.f32 %v1554, -1200.5
  %v1811 = vmul.f32 %v1555, -1200.5
  %v1812 = vmul.f32 %v1556, -1200.5
  %v1813 = vmul.f32 %v1557, -1200.5
  %v1814 = vmul.f32 %v1558, -1200.5
  %v1815 = vmul.f32 %v1559, -1200.5
  %v1816 = vmul.f32 %v1560, -1200.5
  %v1817 = vmul.f32 %v1561, -1200.5
  %v1818 = vmul.f32 %v1562, -1200.5
  %v1819 = vmul.f32 %v1563, -1200.5
  %v1820 = vmul.f32 %v1564, -1200.5
  %v1821 = vmul.f32 %v1565, -1200.5
  %v1822 = vmul.f32 %v1566, -1200.5
  %v1823 = vmul.f32 %v1567, -1200.5
  %v1824 = vmul.f32 %v1568, -1200.5
  %v1825 = vmul.f32 %v1569, -1200.5
  %v1826 = vmul.f32 %v1570, -1200.5
  %v1827 = vmul.f32 %v1571, -1200.5
  %v1828 = vmul.f32 %v1572, -1200.5
  %v1829 = vmul.f32 %v1573, -1200.5
  %v1830 = vmul.f32 %v1574, -1200.5
  %v1831 = vmul.f32 %v1575, -1200.5
  %v1832 = vmul.f32 %v1576, -1200.5
  %v1833 = vmul.f32 %v1577, -1200.5
  %v1834 = vmul.f32 %v1578, -1200.5
  %v1835 = vmul.f32 %v1579, -1200.5
  %v1836 = vmul.f32 %v1580, -1200.5
  %v1837 = vmul.f32 %v1581, -1200.5
  %v1838 = vmul.f32 %v1582, -1200.5
  %v1839 = vmul.f32 %v1583, -1200.5
  %v1840 = vmul.f32 %v1584, -1200.5
  %v1841 = vmul.f32 %v1585, -1200.5
  %v1842 = vmul.f32 %v1586, -1200.5
  %v1843 = vmul.f32 %v1587, -1200.5
  %v1844 = vmul.f32 %v1588, -1200.5
  %v1845 = vmul.f32 %v1589, -1200.5
  %v1846 = vmul.f32 %v1590, -1200.5
  %v1847 = vmul.f32 %v1591, -1200.5
  %v1848 = vmul.f32 %v1592, -1200.5
  %v1849 = vmul.f32 %v1593, -1200.5
  %v1850 = vmul.f32 %v1594, -1200.5
  %v1851 = vmul.f32 %v1595, -1200.5
  %v1852 = vmul.f32 %v1596, -1200.5
  %v1853 = vmul.f32 %v1597, -1200.5
  %v1854 = vmul.f32 %v1598, -1200.5
  %v1855 = vmul.f32 %v1599, -1200.5
  %v1856 = vmul.f32 %v1600, -1200.5
  %v1857 = vmul.f32 %v1601, -1200.5
  %v1858 = vmul.f32 %v1602, -1200.5
  %v1859 = vmul.f32 %v1603, -1200.5
  %v1860 = vmul.f32 %v1604, -1200.5
  %v1861 = vmul.f32 %v1605, -1200.5
  %v1862 = vmul.f32 %v1606, -1200.5
  %v1863 = vmul.f32 %v1607, -1200.5
  %v1864 = vmul.f32 %v1608, -1200.5
  %v1865 = vmul.f32 %v1609, -1200.5
  %v1866 = vmul.f32 %v1610, -1200.5
  %v1867 = vmul.f32 %v1611, -1200.5
  %v1868 = vmul.f32 %v1612, -1200.5
  %v1869 = vmul.f32 %v1613, -1200.5
  %v1870 = vmul.f32 %v1614, -1200.5
  %v1871 = vmul.f32 %v1615, -1200.5
  %v1872 = vmul.f32 %v1616, -1200.5
  %v1873 = vmul.f32 %v1617, -1200.5
  %v1874 = vmul.f32 %v1618, -1200.5
  %v1875 = vmul.f32 %v1619, -1200.5
  %v1876 = vmul.f32 %v1620, -1200.5
  %v1877 = vmul.f32 %v1621, -1200.5
  %v1878 = vmul.f32 %v1622, -1200.5
  %v1879 = vmul.f32 %v1623, -1200.5
  %v1880 = vmul.f32 %v1624, -1200.5
  %v1881 = vmul.f32 %v1625, -1200.5
  %v1882 = vmul.f32 %v1626, -1200.5
  %v1883 = vmul.f32 %v1627, -1200.5
  %v1884 = vmul.f32 %v1628, -1200.5
  %v1885 = vmul.f32 %v1629, -1200.5
  %v1886 = vmul.f32 %v1630, -1200.5
  %v1887 = vmul.f32 %v1631, -1200.5
  %v1888 = vmul.f32 %v1632, -1200.5
  %v1889 = vmul.f32 %v1633, -1200.5
  %v1890 = vmul.f32 %v1634, -1200.5
  %v1891 = vmul.f32 %v1635, -1200.5
  %v1892 = vmul.f32 %v1636, -1200.5
  %v1893 = vmul.f32 %v1637, -1200.5
  %v1894 = vmul.f32 %v1638, -1200.5
  %v1895 = vmul.f32 %v1639, -1200.5
  %v1896 = vmul.f32 %v1640, -1200.5
  %v1897 = vmul.f32 %v1641, -1200.5
  %v1898 = vmul.f32 %v1642, -1200.5
  %v1899 = vmul.f32 %v1643, -1200.5
  %v1900 = vmul.f32 %v1644, -1200.5
  %v1901 = vmul.f32 %v1645, -1200.5
  %v1902 = vmul.f32 %v1646, -1200.5
  %v1903 = vmul.f32 %v1647, -1200.5
  %v1904 = vmul.f32 %v1648, -1200.5
  %v1905 = vmul.f32 %v1649, -1200.5
  %v1906 = vmul.f32 %v1650, -1200.5
  %v1907 = vmul.f32 %v1651, -1200.5
  %v1908 = vmul.f32 %v1652, -1200.5
  %v1909 = vmul.f32 %v1653, -1200.5
  %v1910 = vmul.f32 %v1654, -1200.5
  %v1911 = vmul.f32 %v1655, -1200.5
  %v1912 = vmul.f32 %v1656, -1200.5
  %v1913 = vmul.f32 %v1657, -1200.5
  %v1914 = vmul.f32 %v1658, -1200.5
  %v1915 = vmul.f32 %v1659, -1200.5
  %v1916 = vmul.f32 %v1660, -1200.5
  %v1917 = vmul.f32 %v1661, -1200.5
  %v1918 = vmul.f32 %v1662, -1200.5
  %v1919 = vmul.f32 %v1663, -1200.5
  %v1920 = vmul.f32 %v1664, -1200.5
  %v1921 = vmul.f32 %v1665, -1200.5
  %v1922 = vmul.f32 %v1666, -1200.5
  %v1923 = vmul.f32 %v1667, -1200.5
  %v1924 = vmul.f32 %v1668, -1200.5
  %v1925 = vmul.f32 %v1669, -1200.5
  %v1926 = vmul.f32 %v1670, -1200.5
  %v1927 = vmul.f32 %v1671, -1200.5
  %v1928 = vmul.f32 %v1672, -1200.5
  %v1929 = vmul.f32 %v1673, -1200.5
  %v1930 = vmul.f32 %v1674, -1200.5
  %v1931 = vmul.f32 %v1675, -1200.5
  %v1932 = vmul.f32 %v1676, -1200.5
  %v1933 = vmul.f32 %v1677, -1200.5
  %v1934 = vmul.f32 %v1678, -1200.5
  %v1935 = vmul.f32 %v1679, -1200.5
  %v1936 = vmul.f32 %v1680, -1200.5
  %v1937 = vmul.f32 %v1681, -1200.5
  %v1938 = vmul.f32 %v1682, -1200.5
  %v1939 = vmul.f32 %v1683, -1200.5
  %v1940 = vmul.f32 %v1684, -1200.5
  %v1941 = vmul.f32 %v1685, -1200.5
  %v1942 = vmul.f32 %v1686, -1200.5
  %v1943 = vmul.f32 %v1687, -1200.5
  %v1944 = vmul.f32 %v1688, -1200.5
  %v1945 = vmul.f32 %v1689, -1200.5
  %v1946 = vmul.f32 %v1690, -1200.5
  %v1947 = vmul.f32 %v1691, -1200.5
  %v1948 = vmul.f32 %v1692, -1200.5
  %v1949 = vmul.f32 %v1693, -1200.5
  %v1950 = vmul.f32 %v1694, -1200.5
  %v1951 = vmul.f32 %v1695, -1200.5
  %v1952 = vmul.f32 %v1696, -1200.5
  %v1953 = vmul.f32 %v1697, -1200.5
  %v1954 = vmul.f32 %v1698, -1200.5
  %v1955 = vmul.f32 %v1699, -1200.5
  %v1956 = vmul.f32 %v1700, -1200.5
  %v1957 = vmul.f32 %v1701, -1200.5
  %v1958 = vmul.f32 %v1702, -1200.5
  %v1959 = vmul.f32 %v1703, -1200.5
  %v1960 = vmul.f32 %v1704, -1200.5
  %v1961 = vmul.f32 %v1705, -1200.5
  %v1962 = vmul.f32 %v1706, -1200.5
  %v1963 = vmul.f32 %v1707, -1200.5
  %v1964 = vmul.f32 %v1708, -1200.5
  %v1965 = vmul.f32 %v1709, -1200.5
  %v1966 = vmul.f32 %v1710, -1200.5
  %v1967 = vmul.f32 %v1711, -1200.5
  %v1968 = vmul.f32 %v1712, -1200.5
  %v1969 = vmul.f32 %v1713, -1200.5
  %v1970 = vmul.f32 %v1714, -1200.5
  %v1971 = vmul.f32 %v1715, -1200.5
  %v1972 = vmul.f32 %v1716, -1200.5
  %v1973 = vmul.f32 %v1717, -1200.5
  %v1974 = vmul.f32 %v1718, -1200.5
  %v1975 = vmul.f32 %v1719, -1200.5
  %v1976 = vmul.f32 %v1720, -1200.5
  %v1977 = vmul.f32 %v1721, -1200.5
  %v1978 = vmul.f32 %v1722, -1200.5
  %v1979 = vmul.f32 %v1723, -1200.5
  %v1980 = vmul.f32 %v1724, -1200.5
  %v1981 = vmul.f32 %v1725, -1200.5
  %v1982 = vmul.f32 %v1726, -1200.5
  %v1983 = vmul.f32 %v1727, -1200.5
  %v1984 = vmul.f32 %v1728, -1200.5
  %v1985 = vmul.f32 %v1729, -1200.5
  %v1986 = vmul.f32 %v1730, -1200.5
  %v1987 = vmul.f32 %v1731, -1200.5
  %v1988 = vmul.f32 %v1732, -1200.5
  %v1989 = vmul.f32 %v1733, -1200.5
  %v1990 = vmul.f32 %v1734, -1200.5
  %v1991 = vmul.f32 %v1735, -1200.5
  %v1992 = vmul.f32 %v1736, -1200.5
  %v1993 = vmul.f32 %v1737, -1200.5
  %v1994 = vmul.f32 %v1738, -1200.5
  %v1995 = vmul.f32 %v1739, -1200.5
  %v1996 = vmul.f32 %v1740, -1200.5
  %v1997 = vmul.f32 %v1741, -1200.5
  %v1998 = vmul.f32 %v1742, -1200.5
  %v1999 = vmul.f32 %v1743, -1200.5
  %v2000 = vmul.f32 %v1744, -1200.5
  %v2001 = vmul.f32 %v1745, -1200.5
  %v2002 = vmul.f32 %v1746, -1200.5
  %v2003 = vmul.f32 %v1747, -1200.5
  %v2004 = vmul.f32 %v1748, -1200.5
  %v2005 = vmul.f32 %v1749, -1200.5
  %v2006 = vmul.f32 %v1750, -1200.5
  %v2007 = vmul.f32 %v1751, -1200.5
  %v2008 = vmul.f32 %v1752, -1200.5
  %v2009 = vmul.f32 %v1753, -1200.5
  %v2010 = vmul.f32 %v1754, -1200.5
  %v2011 = vmul.f32 %v1755, -1200.5
  %v2012 = vmul.f32 %v1756, -1200.5
  %v2013 = vmul.f32 %v1757, -1200.5
  %v2014 = vmul.f32 %v1758, -1200.5
  %v2015 = vmul.f32 %v1759, -1200.5
  %v2016 = vmul.f32 %v1760, -1200.5
  %v2017 = vmul.f32 %v1761, -1200.5
  %v2018 = vmul.f32 %v1762, -1200.5
  %v2019 = vmul.f32 %v1763, -1200.5
  %v2020 = vmul.f32 %v1764, -1200.5
  %v2021 = vmul.f32 %v1765, -1200.5
  %v2022 = vmul.f32 %v1766, -1200.5
  %v2023 = vmul.f32 %v1767, -1200.5
  %v2024 = vmul.f32 %v1768, -1200.5
  %v2025 = vmul.f32 %v1769, -1200.5
  %v2026 = vmul.f32 %v1770, -1200.5
  %v2027 = vmul.f32 %v1771, -1200.5
  %v2028 = vmul.f32 %v1772, -1200.5
  %v2029 = vmul.f32 %v1773, -1200.5
  %v2030 = vmul.f32 %v1774, -1200.5
  %v2031 = vmul.f32 %v1775, -1200.5
  %v2032 = vmul.f32 %v1776, -1200.5
  %v2033 = vmul.f32 %v1777, -1200.5
  %v2034 = vmul.f32 %v1778, -1200.5
  %v2035 = vmul.f32 %v1779, -1200.5
  %v2036 = vmul.f32 %v1780, -1200.5
  %v2037 = vmul.f32 %v1781, -1200.5
  %v2038 = vmul.f32 %v1782, -1200.5
  %v2039 = vmul.f32 %v1783, -1200.5
  %v2040 = vmul.f32 %v1784, -1200.5
  %v2041 = vmul.f32 %v1785, -1200.5
  %v2042 = vmul.f32 %v1786, -1200.5
  %v2043 = vmul.f32 %v1787, -1200.5
  %v2044 = vmul.f32 %v1788, -1200.5
  %v2045 = vmul.f32 %v1789, -1200.5
  %v2046 = vmul.f32 %v1790, -1200.5
  %v2047 = vmul.f32 %v1791, -1200.5
  %v2048 = vmul.f32 %v1792, -1200.5
  %v2049 = vmul.f32 %v1793, -1200.5
  %v2050 = vmul.f32 %v1794, -1200.5
  %v2051 = vmul.f32 %v1795, -1200.5
  %v2052 = vmul.f32 %v1796, -1200.5
  %v2053 = vmul.f32 %v1797, -1200.5
  %v2054 = vmul.f32 %v1798, -1200.5
  %v2055 = vmul.f32 %v1799, -1200.5
  %v2056 = vmul.f32 %v1800, -1200.5
  %v2057 = vmul.f32 %v1801, -1200.5
  %v2058 = vmul.f32 %v1802, -1200.5
  %v2059 = vmul.f32 %v1803, -1200.5
  %v2060 = vmul.f32 %v1804, -1200.5
  %v2061 = vmul.f32 %v1805, -1200.5
  %v2062 = vmul.f32 %v1806, -1200.5
  %v2063 = vmul.f32 %v1807, -1200.5
  %v2064 = vmul.f32 %v1808, -1200.5
  %v2065 = vmul.f32 %v1809, -1200.5
  %v2066 = vmul.f32 %v1810, %v1554
  %v2067 = vmul.f32 %v1811, %v1555
  %v2068 = vmul.f32 %v1812, %v1556
  %v2069 = vmul.f32 %v1813, %v1557
  %v2070 = vmul.f32 %v1814, %v1558
  %v2071 = vmul.f32 %v1815, %v1559
  %v2072 = vmul.f32 %v1816, %v1560
  %v2073 = vmul.f32 %v1817, %v1561
  %v2074 = vmul.f32 %v1818, %v1562
  %v2075 = vmul.f32 %v1819, %v1563
  %v2076 = vmul.f32 %v1820, %v1564
  %v2077 = vmul.f32 %v1821, %v1565
  %v2078 = vmul.f32 %v1822, %v1566
  %v2079 = vmul.f32 %v1823, %v1567
  %v2080 = vmul.f32 %v1824, %v1568
  %v2081 = vmul.f32 %v1825, %v1569
  %v2082 = vmul.f32 %v1826, %v1570
  %v2083 = vmul.f32 %v1827, %v1571
  %v2084 = vmul.f32 %v1828, %v1572
  %v2085 = vmul.f32 %v1829, %v1573
  %v2086 = vmul.f32 %v1830, %v1574
  %v2087 = vmul.f32 %v1831, %v1575
  %v2088 = vmul.f32 %v1832, %v1576
  %v2089 = vmul.f32 %v1833, %v1577
  %v2090 = vmul.f32 %v1834, %v1578
  %v2091 = vmul.f32 %v1835, %v1579
  %v2092 = vmul.f32 %v1836, %v1580
  %v2093 = vmul.f32 %v1837, %v1581
  %v2094 = vmul.f32 %v1838, %v1582
  %v2095 = vmul.f32 %v1839, %v1583
  %v2096 = vmul.f32 %v1840, %v1584
  %v2097 = vmul.f32 %v1841, %v1585
  %v2098 = vmul.f32 %v1842, %v1586
  %v2099 = vmul.f32 %v1843, %v1587
  %v2100 = vmul.f32 %v1844, %v1588
  %v2101 = vmul.f32 %v1845, %v1589
  %v2102 = vmul.f32 %v1846, %v1590
  %v2103 = vmul.f32 %v1847, %v1591
  %v2104 = vmul.f32 %v1848, %v1592
  %v2105 = vmul.f32 %v1849, %v1593
  %v2106 = vmul.f32 %v1850, %v1594
  %v2107 = vmul.f32 %v1851, %v1595
  %v2108 = vmul.f32 %v1852, %v1596
  %v2109 = vmul.f32 %v1853, %v1597
  %v2110 = vmul.f32 %v1854, %v1598
  %v2111 = vmul.f32 %v1855, %v1599
  %v2112 = vmul.f32 %v1856, %v1600
  %v2113 = vmul.f32 %v1857, %v1601
  %v2114 = vmul.f32 %v1858, %v1602
  %v2115 = vmul.f32 %v1859, %v1603
  %v2116 = vmul.f32 %v1860, %v1604
  %v2117 = vmul.f32 %v1861, %v1605
  %v2118 = vmul.f32 %v1862, %v1606
  %v2119 = vmul.f32 %v1863, %v1607
  %v2120 = vmul.f32 %v1864, %v1608
  %v2121 = vmul.f32 %v1865, %v1609
  %v2122 = vmul.f32 %v1866, %v1610
  %v2123 = vmul.f32 %v1867, %v1611
  %v2124 = vmul.f32 %v1868, %v1612
  %v2125 = vmul.f32 %v1869, %v1613
  %v2126 = vmul.f32 %v1870, %v1614
  %v2127 = vmul.f32 %v1871, %v1615
  %v2128 = vmul.f32 %v1872, %v1616
  %v2129 = vmul.f32 %v1873, %v1617
  %v2130 = vmul.f32 %v1874, %v1618
  %v2131 = vmul.f32 %v1875, %v1619
  %v2132 = vmul.f32 %v1876, %v1620
  %v2133 = vmul.f32 %v1877, %v1621
  %v2134 = vmul.f32 %v1878, %v1622
  %v2135 = vmul.f32 %v1879, %v1623
  %v2136 = vmul.f32 %v1880, %v1624
  %v2137 = vmul.f32 %v1881, %v1625
  %v2138 = vmul.f32 %v1882, %v1626
  %v2139 = vmul.f32 %v1883, %v1627
  %v2140 = vmul.f32 %v1884, %v1628
  %v2141 = vmul.f32 %v1885, %v1629
  %v2142 = vmul.f32 %v1886, %v1630
  %v2143 = vmul.f32 %v1887, %v1631
  %v2144 = vmul.f32 %v1888, %v1632
  %v2145 = vmul.f32 %v1889, %v1633
  %v2146 = vmul.f32 %v1890, %v1634
  %v2147 = vmul.f32 %v1891, %v1635
  %v2148 = vmul.f32 %v1892, %v1636
  %v2149 = vmul.f32 %v1893, %v1637
  %v2150 = vmul.f32 %v1894, %v1638
  %v2151 = vmul.f32 %v1895, %v1639
  %v2152 = vmul.f32 %v1896, %v1640
  %v2153 = vmul.f32 %v1897, %v1641
  %v2154 = vmul.f32 %v1898, %v1642
  %v2155 = vmul.f32 %v1899, %v1643
  %v2156 = vmul.f32 %v1900, %v1644
  %v2157 = vmul.f32 %v1901, %v1645
  %v2158 = vmul.f32 %v1902, %v1646
  %v2159 = vmul.f32 %v1903, %v1647
  %v2160 = vmul.f32 %v1904, %v1648
  %v2161 = vmul.f32 %v1905, %v1649
  %v2162 = vmul.f32 %v1906, %v1650
  %v2163 = vmul.f32 %v1907, %v1651
  %v2164 = vmul.f32 %v1908, %v1652
  %v2165 = vmul.f32 %v1909, %v1653
  %v2166 = vmul.f32 %v1910, %v1654
  %v2167 = vmul.f32 %v1911, %v1655
  %v2168 = vmul.f32 %v1912, %v1656
  %v2169 = vmul.f32 %v1913, %v1657
  %v2170 = vmul.f32 %v1914, %v1658
  %v2171 = vmul.f32 %v1915, %v1659
  %v2172 = vmul.f32 %v1916, %v1660
  %v2173 = vmul.f32 %v1917, %v1661
  %v2174 = vmul.f32 %v1918, %v1662
  %v2175 = vmul.f32 %v1919, %v1663
  %v2176 = vmul.f32 %v1920, %v1664
  %v2177 = vmul.f32 %v1921, %v1665
  %v2178 = vmul.f32 %v1922, %v1666
  %v2179 = vmul.f32 %v1923, %v1667
  %v2180 = vmul.f32 %v1924, %v1668
  %v2181 = vmul.f32 %v1925, %v1669
  %v2182 = vmul.f32 %v1926, %v1670
  %v2183 = vmul.f32 %v1927, %v1671
  %v2184 = vmul.f32 %v1928, %v1672
  %v2185 = vmul.f32 %v1929, %v1673
  %v2186 = vmul.f32 %v1930, %v1674
  %v2187 = vmul.f32 %v1931, %v1675
  %v2188 = vmul.f32 %v1932, %v1676
  %v2189 = vmul.f32 %v1933, %v1677
  %v2190 = vmul.f32 %v1934, %v1678
  %v2191 = vmul.f32 %v1935, %v1679
  %v2192 = vmul.f32 %v1936, %v1680
  %v2193 = vmul.f32 %v1937, %v1681
  %v2194 = vmul.f32 %v1938, %v1682
  %v2195 = vmul.f32 %v1939, %v1683
  %v2196 = vmul.f32 %v1940, %v1684
  %v2197 = vmul.f32 %v1941, %v1685
  %v2198 = vmul.f32 %v1942, %v1686
  %v2199 = vmul.f32 %v1943, %v1687
  %v2200 = vmul.f32 %v1944, %v1688
  %v2201 = vmul.f32 %v1945, %v1689
  %v2202 = vmul.f32 %v1946, %v1690
  %v2203 = vmul.f32 %v1947, %v1691
  %v2204 = vmul.f32 %v1948, %v1692
  %v2205 = vmul.f32 %v1949, %v1693
  %v2206 = vmul.f32 %v1950, %v1694
  %v2207 = vmul.f32 %v1951, %v1695
  %v2208 = vmul.f32 %v1952, %v1696
  %v2209 = vmul.f32 %v1953, %v1697
  %v2210 = vmul.f32 %v1954, %v1698
  %v2211 = vmul.f32 %v1955, %v1699
  %v2212 = vmul.f32 %v1956, %v1700
  %v2213 = vmul.f32 %v1957, %v1701
  %v2214 = vmul.f32 %v1958, %v1702
  %v2215 = vmul.f32 %v1959, %v1703
  %v2216 = vmul.f32 %v1960, %v1704
  %v2217 = vmul.f32 %v1961, %v1705
  %v2218 = vmul.f32 %v1962, %v1706
  %v2219 = vmul.f32 %v1963, %v1707
  %v2220 = vmul.f32 %v1964, %v1708
  %v2221 = vmul.f32 %v1965, %v1709
  %v2222 = vmul.f32 %v1966, %v1710
  %v2223 = vmul.f32 %v1967, %v1711
  %v2224 = vmul.f32 %v1968, %v1712
  %v2225 = vmul.f32 %v1969, %v1713
  %v2226 = vmul.f32 %v1970, %v1714
  %v2227 = vmul.f32 %v1971, %v1715
  %v2228 = vmul.f32 %v1972, %v1716
  %v2229 = vmul.f32 %v1973, %v1717
  %v2230 = vmul.f32 %v1974, %v1718
  %v2231 = vmul.f32 %v1975, %v1719
  %v2232 = vmul.f32 %v1976, %v1720
  %v2233 = vmul.f32 %v1977, %v1721
  %v2234 = vmul.f32 %v1978, %v1722
  %v2235 = vmul.f32 %v1979, %v1723
  %v2236 = vmul.f32 %v1980, %v1724
  %v2237 = vmul.f32 %v1981, %v1725
  %v2238 = vmul.f32 %v1982, %v1726
  %v2239 = vmul.f32 %v1983, %v1727
  %v2240 = vmul.f32 %v1984, %v1728
  %v2241 = vmul.f32 %v1985, %v1729
  %v2242 = vmul.f32 %v1986, %v1730
  %v2243 = vmul.f32 %v1987, %v1731
  %v2244 = vmul.f32 %v1988, %v1732
  %v2245 = vmul.f32 %v1989, %v1733
  %v2246 = vmul.f32 %v1990, %v1734
  %v2247 = vmul.f32 %v1991, %v1735
  %v2248 = vmul.f32 %v1992, %v1736
  %v2249 = vmul.f32 %v1993, %v1737
  %v2250 = vmul.f32 %v1994, %v1738
  %v2251 = vmul.f32 %v1995, %v1739
  %v2252 = vmul.f32 %v1996, %v1740
  %v2253 = vmul.f32 %v1997, %v1741
  %v2254 = vmul.f32 %v1998, %v1742
  %v2255 = vmul.f32 %v1999, %v1743
  %v2256 = vmul.f32 %v2000, %v1744
  %v2257 = vmul.f32 %v2001, %v1745
  %v2258 = vmul.f32 %v2002, %v1746
  %v2259 = vmul.f32 %v2003, %v1747
  %v2260 = vmul.f32 %v2004, %v1748
  %v2261 = vmul.f32 %v2005, %v1749
  %v2262 = vmul.f32 %v2006, %v1750
  %v2263 = vmul.f32 %v2007, %v1751
  %v2264 = vmul.f32 %v2008, %v1752
  %v2265 = vmul.f32 %v2009, %v1753
  %v2266 = vmul.f32 %v2010, %v1754
  %v2267 = vmul.f32 %v2011, %v1755
  %v2268 = vmul.f32 %v2012, %v1756
  %v2269 = vmul.f32 %v2013, %v1757
  %v2270 = vmul.f32 %v2014, %v1758
  %v2271 = vmul.f32 %v2015, %v1759
  %v2272 = vmul.f32 %v2016, %v1760
  %v2273 = vmul.f32 %v2017, %v1761
  %v2274 = vmul.f32 %v2018, %v1762
  %v2275 = vmul.f32 %v2019, %v1763
  %v2276 = vmul.f32 %v2020, %v1764
  %v2277 = vmul.f32 %v2021, %v1765
  %v2278 = vmul.f32 %v2022, %v1766
  %v2279 = vmul.f32 %v2023, %v1767
  %v2280 = vmul.f32 %v2024, %v1768
  %v2281 = vmul.f32 %v2025, %v1769
  %v2282 = vmul.f32 %v2026, %v1770
  %v2283 = vmul.f32 %v2027, %v1771
  %v2284 = vmul.f32 %v2028, %v1772
  %v2285 = vmul.f32 %v2029, %v1773
  %v2286 = vmul.f32 %v2030, %v1774
  %v2287 = vmul.f32 %v2031, %v1775
  %v2288 = vmul.f32 %v2032, %v1776
  %v2289 = vmul.f32 %v2033, %v1777
  %v2290 = vmul.f32 %v2034, %v1778
  %v2291 = vmul.f32 %v2035, %v1779
  %v2292 = vmul.f32 %v2036, %v1780
  %v2293 = vmul.f32 %v2037, %v1781
  %v2294 = vmul.f32 %v2038, %v1782
  %v2295 = vmul.f32 %v2039, %v1783
  %v2296 = vmul.f32 %v2040, %v1784
  %v2297 = vmul.f32 %v2041, %v1785
  %v2298 = vmul.f32 %v2042, %v1786
  %v2299 = vmul.f32 %v2043, %v1787
  %v2300 = vmul.f32 %v2044, %v1788
  %v2301 = vmul.f32 %v2045, %v1789
  %v2302 = vmul.f32 %v2046, %v1790
  %v2303 = vmul.f32 %v2047, %v1791
  %v2304 = vmul.f32 %v2048, %v1792
  %v2305 = vmul.f32 %v2049, %v1793
  %v2306 = vmul.f32 %v2050, %v1794
  %v2307 = vmul.f32 %v2051, %v1795
  %v2308 = vmul.f32 %v2052, %v1796
  %v2309 = vmul.f32 %v2053, %v1797
  %v2310 = vmul.f32 %v2054, %v1798
  %v2311 = vmul.f32 %v2055, %v1799
  %v2312 = vmul.f32 %v2056, %v1800
  %v2313 = vmul.f32 %v2057, %v1801
  %v2314 = vmul.f32 %v2058, %v1802
  %v2315 = vmul.f32 %v2059, %v1803
  %v2316 = vmul.f32 %v2060, %v1804
  %v2317 = vmul.f32 %v2061, %v1805
  %v2318 = vmul.f32 %v2062, %v1806
  %v2319 = vmul.f32 %v2063, %v1807
  %v2320 = vmul.f32 %v2064, %v1808
  %v2321 = vmul.f32 %v2065, %v1809
  %v2322 = vmul.f32 %v2066, 1.442695
  %v2323 = vpow.pop %v2322
  %v2324 = vmul.f32 %v2067, 1.442695
  %v2325 = vpow.pop %v2324
  %v2326 = vmul.f32 %v2068, 1.442695
  %v2327 = vpow.pop %v2326
  %v2328 = vmul.f32 %v2069, 1.442695
  %v2329 = vpow.pop %v2328
  %v2330 = vmul.f32 %v2070, 1.442695
  %v2331 = vpow.pop %v2330
  %v2332 = vmul.f32 %v2071, 1.442695
  %v2333 = vpow.pop %v2332
  %v2334 = vmul.f32 %v2072, 1.442695
  %v2335 = vpow.pop %v2334
  %v2336 = vmul.f32 %v2073, 1.442695
  %v2337 = vpow.pop %v2336
  %v2338 = vmul.f32 %v2074, 1.442695
  %v2339 = vpow.pop %v2338
  %v2340 = vmul.f32 %v2075, 1.442695
  %v2341 = vpow.pop %v2340
  %v2342 = vmul.f32 %v2076, 1.442695
  %v2343 = vpow.pop %v2342
  %v2344 = vmul.f32 %v2077, 1.442695
  %v2345 = vpow.pop %v2344
  %v2346 = vmul.f32 %v2078, 1.442695
  %v2347 = vpow.pop %v2346
  %v2348 = vmul.f32 %v2079, 1.442695
  %v2349 = vpow.pop %v2348
  %v2350 = vmul.f32 %v2080, 1.442695
  %v2351 = vpow.pop %v2350
  %v2352 = vmul.f32 %v2081, 1.442695
  %v2353 = vpow.pop %v2352
  %v2354 = vmul.f32 %v2082, 1.442695
  %v2355 = vpow.pop %v2354
  %v2356 = vmul.f32 %v2083, 1.442695
  %v2357 = vpow.pop %v2356
  %v2358 = vmul.f32 %v2084, 1.442695
  %v2359 = vpow.pop %v2358
  %v2360 = vmul.f32 %v2085, 1.442695
  %v2361 = vpow.pop %v2360
  %v2362 = vmul.f32 %v2086, 1.442695
  %v2363 = vpow.pop %v2362
  %v2364 = vmul.f32 %v2087, 1.442695
  %v2365 = vpow.pop %v2364
  %v2366 = vmul.f32 %v2088, 1.442695
  %v2367 = vpow.pop %v2366
  %v2368 = vmul.f32 %v2089, 1.442695
  %v2369 = vpow.pop %v2368
  %v2370 = vmul.f32 %v2090, 1.442695
  %v2371 = vpow.pop %v2370
  %v2372 = vmul.f32 %v2091, 1.442695
  %v2373 = vpow.pop %v2372
  %v2374 = vmul.f32 %v2092, 1.442695
  %v2375 = vpow.pop %v2374
  %v2376 = vmul.f32 %v2093, 1.442695
  %v2377 = vpow.pop %v2376
  %v2378 = vmul.f32 %v2094, 1.442695
  %v2379 = vpow.pop %v2378
  %v2380 = vmul.f32 %v2095, 1.442695
  %v2381 = vpow.pop %v2380
  %v2382 = vmul.f32 %v2096, 1.442695
  %v2383 = vpow.pop %v2382
  %v2384 = vmul.f32 %v2097, 1.442695
  %v2385 = vpow.pop %v2384
  %v2386 = vmul.f32 %v2098, 1.442695
  %v2387 = vpow.pop %v2386
  %v2388 = vmul.f32 %v2099, 1.442695
  %v2389 = vpow.pop %v2388
  %v2390 = vmul.f32 %v2100, 1.442695
  %v2391 = vpow.pop %v2390
  %v2392 = vmul.f32 %v2101, 1.442695
  %v2393 = vpow.pop %v2392
  %v2394 = vmul.f32 %v2102, 1.442695
  %v2395 = vpow.pop %v2394
  %v2396 = vmul.f32 %v2103, 1.442695
  %v2397 = vpow.pop %v2396
  %v2398 = vmul.f32 %v2104, 1.442695
  %v2399 = vpow.pop %v2398
  %v2400 = vmul.f32 %v2105, 1.442695
  %v2401 = vpow.pop %v2400
  %v2402 = vmul.f32 %v2106, 1.442695
  %v2403 = vpow.pop %v2402
  %v2404 = vmul.f32 %v2107, 1.442695
  %v2405 = vpow.pop %v2404
  %v2406 = vmul.f32 %v2108, 1.442695
  %v2407 = vpow.pop %v2406
  %v2408 = vmul.f32 %v2109, 1.442695
  %v2409 = vpow.pop %v2408
  %v2410 = vmul.f32 %v2110, 1.442695
  %v2411 = vpow.pop %v2410
  %v2412 = vmul.f32 %v2111, 1.442695
  %v2413 = vpow.pop %v2412
  %v2414 = vmul.f32 %v2112, 1.442695
  %v2415 = vpow.pop %v2414
  %v2416 = vmul.f32 %v2113, 1.442695
  %v2417 = vpow.pop %v2416
  %v2418 = vmul.f32 %v2114, 1.442695
  %v2419 = vpow.pop %v2418
  %v2420 = vmul.f32 %v2115, 1.442695
  %v2421 = vpow.pop %v2420
  %v2422 = vmul.f32 %v2116, 1.442695
  %v2423 = vpow.pop %v2422
  %v2424 = vmul.f32 %v2117, 1.442695
  %v2425 = vpow.pop %v2424
  %v2426 = vmul.f32 %v2118, 1.442695
  %v2427 = vpow.pop %v2426
  %v2428 = vmul.f32 %v2119, 1.442695
  %v2429 = vpow.pop %v2428
  %v2430 = vmul.f32 %v2120, 1.442695
  %v2431 = vpow.pop %v2430
  %v2432 = vmul.f32 %v2121, 1.442695
  %v2433 = vpow.pop %v2432
  %v2434 = vmul.f32 %v2122, 1.442695
  %v2435 = vpow.pop %v2434
  %v2436 = vmul.f32 %v2123, 1.442695
  %v2437 = vpow.pop %v2436
  %v2438 = vmul.f32 %v2124, 1.442695
  %v2439 = vpow.pop %v2438
  %v2440 = vmul.f32 %v2125, 1.442695
  %v2441 = vpow.pop %v2440
  %v2442 = vmul.f32 %v2126, 1.442695
  %v2443 = vpow.pop %v2442
  %v2444 = vmul.f32 %v2127, 1.442695
  %v2445 = vpow.pop %v2444
  %v2446 = vmul.f32 %v2128, 1.442695
  %v2447 = vpow.pop %v2446
  %v2448 = vmul.f32 %v2129, 1.442695
  %v2449 = vpow.pop %v2448
  %v2450 = vmul.f32 %v2130, 1.442695
  %v2451 = vpow.pop %v2450
  %v2452 = vmul.f32 %v2131, 1.442695
  %v2453 = vpow.pop %v2452
  %v2454 = vmul.f32 %v2132, 1.442695
  %v2455 = vpow.pop %v2454
  %v2456 = vmul.f32 %v2133, 1.442695
  %v2457 = vpow.pop %v2456
  %v2458 = vmul.f32 %v2134, 1.442695
  %v2459 = vpow.pop %v2458
  %v2460 = vmul.f32 %v2135, 1.442695
  %v2461 = vpow.pop %v2460
  %v2462 = vmul.f32 %v2136, 1.442695
  %v2463 = vpow.pop %v2462
  %v2464 = vmul.f32 %v2137, 1.442695
  %v2465 = vpow.pop %v2464
  %v2466 = vmul.f32 %v2138, 1.442695
  %v2467 = vpow.pop %v2466
  %v2468 = vmul.f32 %v2139, 1.442695
  %v2469 = vpow.pop %v2468
  %v2470 = vmul.f32 %v2140, 1.442695
  %v2471 = vpow.pop %v2470
  %v2472 = vmul.f32 %v2141, 1.442695
  %v2473 = vpow.pop %v2472
  %v2474 = vmul.f32 %v2142, 1.442695
  %v2475 = vpow.pop %v2474
  %v2476 = vmul.f32 %v2143, 1.442695
  %v2477 = vpow.pop %v2476
  %v2478 = vmul.f32 %v2144, 1.442695
  %v2479 = vpow.pop %v2478
  %v2480 = vmul.f32 %v2145, 1.442695
  %v2481 = vpow.pop %v2480
  %v2482 = vmul.f32 %v2146, 1.442695
  %v2483 = vpow.pop %v2482
  %v2484 = vmul.f32 %v2147, 1.442695
  %v2485 = vpow.pop %v2484
  %v2486 = vmul.f32 %v2148, 1.442695
  %v2487 = vpow.pop %v2486
  %v2488 = vmul.f32 %v2149, 1.442695
  %v2489 = vpow.pop %v2488
  %v2490 = vmul.f32 %v2150, 1.442695
  %v2491 = vpow.pop %v2490
  %v2492 = vmul.f32 %v2151, 1.442695
  %v2493 = vpow.pop %v2492
  %v2494 = vmul.f32 %v2152, 1.442695
  %v2495 = vpow.pop %v2494
  %v2496 = vmul.f32 %v2153, 1.442695
  %v2497 = vpow.pop %v2496
  %v2498 = vmul.f32 %v2154, 1.442695
  %v2499 = vpow.pop %v2498
  %v2500 = vmul.f32 %v2155, 1.442695
  %v2501 = vpow.pop %v2500
  %v2502 = vmul.f32 %v2156, 1.442695
  %v2503 = vpow.pop %v2502
  %v2504 = vmul.f32 %v2157, 1.442695
  %v2505 = vpow.pop %v2504
  %v2506 = vmul.f32 %v2158, 1.442695
  %v2507 = vpow.pop %v2506
  %v2508 = vmul.f32 %v2159, 1.442695
  %v2509 = vpow.pop %v2508
  %v2510 = vmul.f32 %v2160, 1.442695
  %v2511 = vpow.pop %v2510
  %v2512 = vmul.f32 %v2161, 1.442695
  %v2513 = vpow.pop %v2512
  %v2514 = vmul.f32 %v2162, 1.442695
  %v2515 = vpow.pop %v2514
  %v2516 = vmul.f32 %v2163, 1.442695
  %v2517 = vpow.pop %v2516
  %v2518 = vmul.f32 %v2164, 1.442695
  %v2519 = vpow.pop %v2518
  %v2520 = vmul.f32 %v2165, 1.442695
  %v2521 = vpow.pop %v2520
  %v2522 = vmul.f32 %v2166, 1.442695
  %v2523 = vpow.pop %v2522
  %v2524 = vmul.f32 %v2167, 1.442695
  %v2525 = vpow.pop %v2524
  %v2526 = vmul.f32 %v2168, 1.442695
  %v2527 = vpow.pop %v2526
  %v2528 = vmul.f32 %v2169, 1.442695
  %v2529 = vpow.pop %v2528
  %v2530 = vmul.f32 %v2170, 1.442695
  %v2531 = vpow.pop %v2530
  %v2532 = vmul.f32 %v2171, 1.442695
  %v2533 = vpow.pop %v2532
  %v2534 = vmul.f32 %v2172, 1.442695
  %v2535 = vpow.pop %v2534
  %v2536 = vmul.f32 %v2173, 1.442695
  %v2537 = vpow.pop %v2536
  %v2538 = vmul.f32 %v2174, 1.442695
  %v2539 = vpow.pop %v2538
  %v2540 = vmul.f32 %v2175, 1.442695
  %v2541 = vpow.pop %v2540
  %v2542 = vmul.f32 %v2176, 1.442695
  %v2543 = vpow.pop %v2542
  %v2544 = vmul.f32 %v2177, 1.442695
  %v2545 = vpow.pop %v2544
  %v2546 = vmul.f32 %v2178, 1.442695
  %v2547 = vpow.pop %v2546
  %v2548 = vmul.f32 %v2179, 1.442695
  %v2549 = vpow.pop %v2548
  %v2550 = vmul.f32 %v2180, 1.442695
  %v2551 = vpow.pop %v2550
  %v2552 = vmul.f32 %v2181, 1.442695
  %v2553 = vpow.pop %v2552
  %v2554 = vmul.f32 %v2182, 1.442695
  %v2555 = vpow.pop %v2554
  %v2556 = vmul.f32 %v2183, 1.442695
  %v2557 = vpow.pop %v2556
  %v2558 = vmul.f32 %v2184, 1.442695
  %v2559 = vpow.pop %v2558
  %v2560 = vmul.f32 %v2185, 1.442695
  %v2561 = vpow.pop %v2560
  %v2562 = vmul.f32 %v2186, 1.442695
  %v2563 = vpow.pop %v2562
  %v2564 = vmul.f32 %v2187, 1.442695
  %v2565 = vpow.pop %v2564
  %v2566 = vmul.f32 %v2188, 1.442695
  %v2567 = vpow.pop %v2566
  %v2568 = vmul.f32 %v2189, 1.442695
  %v2569 = vpow.pop %v2568
  %v2570 = vmul.f32 %v2190, 1.442695
  %v2571 = vpow.pop %v2570
  %v2572 = vmul.f32 %v2191, 1.442695
  %v2573 = vpow.pop %v2572
  %v2574 = vmul.f32 %v2192, 1.442695
  %v2575 = vpow.pop %v2574
  %v2576 = vmul.f32 %v2193, 1.442695
  %v2577 = vpow.pop %v2576
  %v2578 = vmul.f32 %v2194, 1.442695
  %v2579 = vpow.pop %v2578
  %v2580 = vmul.f32 %v2195, 1.442695
  %v2581 = vpow.pop %v2580
  %v2582 = vmul.f32 %v2196, 1.442695
  %v2583 = vpow.pop %v2582
  %v2584 = vmul.f32 %v2197, 1.442695
  %v2585 = vpow.pop %v2584
  %v2586 = vmul.f32 %v2198, 1.442695
  %v2587 = vpow.pop %v2586
  %v2588 = vmul.f32 %v2199, 1.442695
  %v2589 = vpow.pop %v2588
  %v2590 = vmul.f32 %v2200, 1.442695
  %v2591 = vpow.pop %v2590
  %v2592 = vmul.f32 %v2201, 1.442695
  %v2593 = vpow.pop %v2592
  %v2594 = vmul.f32 %v2202, 1.442695
  %v2595 = vpow.pop %v2594
  %v2596 = vmul.f32 %v2203, 1.442695
  %v2597 = vpow.pop %v2596
  %v2598 = vmul.f32 %v2204, 1.442695
  %v2599 = vpow.pop %v2598
  %v2600 = vmul.f32 %v2205, 1.442695
  %v2601 = vpow.pop %v2600
  %v2602 = vmul.f32 %v2206, 1.442695
  %v2603 = vpow.pop %v2602
  %v2604 = vmul.f32 %v2207, 1.442695
  %v2605 = vpow.pop %v2604
  %v2606 = vmul.f32 %v2208, 1.442695
  %v2607 = vpow.pop %v2606
  %v2608 = vmul.f32 %v2209, 1.442695
  %v2609 = vpow.pop %v2608
  %v2610 = vmul.f32 %v2210, 1.442695
  %v2611 = vpow.pop %v2610
  %v2612 = vmul.f32 %v2211, 1.442695
  %v2613 = vpow.pop %v2612
  %v2614 = vmul.f32 %v2212, 1.442695
  %v2615 = vpow.pop %v2614
  %v2616 = vmul.f32 %v2213, 1.442695
  %v2617 = vpow.pop %v2616
  %v2618 = vmul.f32 %v2214, 1.442695
  %v2619 = vpow.pop %v2618
  %v2620 = vmul.f32 %v2215, 1.442695
  %v2621 = vpow.pop %v2620
  %v2622 = vmul.f32 %v2216, 1.442695
  %v2623 = vpow.pop %v2622
  %v2624 = vmul.f32 %v2217, 1.442695
  %v2625 = vpow.pop %v2624
  %v2626 = vmul.f32 %v2218, 1.442695
  %v2627 = vpow.pop %v2626
  %v2628 = vmul.f32 %v2219, 1.442695
  %v2629 = vpow.pop %v2628
  %v2630 = vmul.f32 %v2220, 1.442695
  %v2631 = vpow.pop %v2630
  %v2632 = vmul.f32 %v2221, 1.442695
  %v2633 = vpow.pop %v2632
  %v2634 = vmul.f32 %v2222, 1.442695
  %v2635 = vpow.pop %v2634
  %v2636 = vmul.f32 %v2223, 1.442695
  %v2637 = vpow.pop %v2636
  %v2638 = vmul.f32 %v2224, 1.442695
  %v2639 = vpow.pop %v2638
  %v2640 = vmul.f32 %v2225, 1.442695
  %v2641 = vpow.pop %v2640
  %v2642 = vmul.f32 %v2226, 1.442695
  %v2643 = vpow.pop %v2642
  %v2644 = vmul.f32 %v2227, 1.442695
  %v2645 = vpow.pop %v2644
  %v2646 = vmul.f32 %v2228, 1.442695
  %v2647 = vpow.pop %v2646
  %v2648 = vmul.f32 %v2229, 1.442695
  %v2649 = vpow.pop %v2648
  %v2650 = vmul.f32 %v2230, 1.442695
  %v2651 = vpow.pop %v2650
  %v2652 = vmul.f32 %v2231, 1.442695
  %v2653 = vpow.pop %v2652
  %v2654 = vmul.f32 %v2232, 1.442695
  %v2655 = vpow.pop %v2654
  %v2656 = vmul.f32 %v2233, 1.442695
  %v2657 = vpow.pop %v2656
  %v2658 = vmul.f32 %v2234, 1.442695
  %v2659 = vpow.pop %v2658
  %v2660 = vmul.f32 %v2235, 1.442695
  %v2661 = vpow.pop %v2660
  %v2662 = vmul.f32 %v2236, 1.442695
  %v2663 = vpow.pop %v2662
  %v2664 = vmul.f32 %v2237, 1.442695
  %v2665 = vpow.pop %v2664
  %v2666 = vmul.f32 %v2238, 1.442695
  %v2667 = vpow.pop %v2666
  %v2668 = vmul.f32 %v2239, 1.442695
  %v2669 = vpow.pop %v2668
  %v2670 = vmul.f32 %v2240, 1.442695
  %v2671 = vpow.pop %v2670
  %v2672 = vmul.f32 %v2241, 1.442695
  %v2673 = vpow.pop %v2672
  %v2674 = vmul.f32 %v2242, 1.442695
  %v2675 = vpow.pop %v2674
  %v2676 = vmul.f32 %v2243, 1.442695
  %v2677 = vpow.pop %v2676
  %v2678 = vmul.f32 %v2244, 1.442695
  %v2679 = vpow.pop %v2678
  %v2680 = vmul.f32 %v2245, 1.442695
  %v2681 = vpow.pop %v2680
  %v2682 = vmul.f32 %v2246, 1.442695
  %v2683 = vpow.pop %v2682
  %v2684 = vmul.f32 %v2247, 1.442695
  %v2685 = vpow.pop %v2684
  %v2686 = vmul.f32 %v2248, 1.442695
  %v2687 = vpow.pop %v2686
  %v2688 = vmul.f32 %v2249, 1.442695
  %v2689 = vpow.pop %v2688
  %v2690 = vmul.f32 %v2250, 1.442695
  %v2691 = vpow.pop %v2690
  %v2692 = vmul.f32 %v2251, 1.442695
  %v2693 = vpow.pop %v2692
  %v2694 = vmul.f32 %v2252, 1.442695
  %v2695 = vpow.pop %v2694
  %v2696 = vmul.f32 %v2253, 1.442695
  %v2697 = vpow.pop %v2696
  %v2698 = vmul.f32 %v2254, 1.442695
  %v2699 = vpow.pop %v2698
  %v2700 = vmul.f32 %v2255, 1.442695
  %v2701 = vpow.pop %v2700
  %v2702 = vmul.f32 %v2256, 1.442695
  %v2703 = vpow.pop %v2702
  %v2704 = vmul.f32 %v2257, 1.442695
  %v2705 = vpow.pop %v2704
  %v2706 = vmul.f32 %v2258, 1.442695
  %v2707 = vpow.pop %v2706
  %v2708 = vmul.f32 %v2259, 1.442695
  %v2709 = vpow.pop %v2708
  %v2710 = vmul.f32 %v2260, 1.442695
  %v2711 = vpow.pop %v2710
  %v2712 = vmul.f32 %v2261, 1.442695
  %v2713 = vpow.pop %v2712
  %v2714 = vmul.f32 %v2262, 1.442695
  %v2715 = vpow.pop %v2714
  %v2716 = vmul.f32 %v2263, 1.442695
  %v2717 = vpow.pop %v2716
  %v2718 = vmul.f32 %v2264, 1.442695
  %v2719 = vpow.pop %v2718
  %v2720 = vmul.f32 %v2265, 1.442695
  %v2721 = vpow.pop %v2720
  %v2722 = vmul.f32 %v2266, 1.442695
  %v2723 = vpow.pop %v2722
  %v2724 = vmul.f32 %v2267, 1.442695
  %v2725 = vpow.pop %v2724
  %v2726 = vmul.f32 %v2268, 1.442695
  %v2727 = vpow.pop %v2726
  %v2728 = vmul.f32 %v2269, 1.442695
  %v2729 = vpow.pop %v2728
  %v2730 = vmul.f32 %v2270, 1.442695
  %v2731 = vpow.pop %v2730
  %v2732 = vmul.f32 %v2271, 1.442695
  %v2733 = vpow.pop %v2732
  %v2734 = vmul.f32 %v2272, 1.442695
  %v2735 = vpow.pop %v2734
  %v2736 = vmul.f32 %v2273, 1.442695
  %v2737 = vpow.pop %v2736
  %v2738 = vmul.f32 %v2274, 1.442695
  %v2739 = vpow.pop %v2738
  %v2740 = vmul.f32 %v2275, 1.442695
  %v2741 = vpow.pop %v2740
  %v2742 = vmul.f32 %v2276, 1.442695
  %v2743 = vpow.pop %v2742
  %v2744 = vmul.f32 %v2277, 1.442695
  %v2745 = vpow.pop %v2744
  %v2746 = vmul.f32 %v2278, 1.442695
  %v2747 = vpow.pop %v2746
  %v2748 = vmul.f32 %v2279, 1.442695
  %v2749 = vpow.pop %v2748
  %v2750 = vmul.f32 %v2280, 1.442695
  %v2751 = vpow.pop %v2750
  %v2752 = vmul.f32 %v2281, 1.442695
  %v2753 = vpow.pop %v2752
  %v2754 = vmul.f32 %v2282, 1.442695
  %v2755 = vpow.pop %v2754
  %v2756 = vmul.f32 %v2283, 1.442695
  %v2757 = vpow.pop %v2756
  %v2758 = vmul.f32 %v2284, 1.442695
  %v2759 = vpow.pop %v2758
  %v2760 = vmul.f32 %v2285, 1.442695
  %v2761 = vpow.pop %v2760
  %v2762 = vmul.f32 %v2286, 1.442695
  %v2763 = vpow.pop %v2762
  %v2764 = vmul.f32 %v2287, 1.442695
  %v2765 = vpow.pop %v2764
  %v2766 = vmul.f32 %v2288, 1.442695
  %v2767 = vpow.pop %v2766
  %v2768 = vmul.f32 %v2289, 1.442695
  %v2769 = vpow.pop %v2768
  %v2770 = vmul.f32 %v2290, 1.442695
  %v2771 = vpow.pop %v2770
  %v2772 = vmul.f32 %v2291, 1.442695
  %v2773 = vpow.pop %v2772
  %v2774 = vmul.f32 %v2292, 1.442695
  %v2775 = vpow.pop %v2774
  %v2776 = vmul.f32 %v2293, 1.442695
  %v2777 = vpow.pop %v2776
  %v2778 = vmul.f32 %v2294, 1.442695
  %v2779 = vpow.pop %v2778
  %v2780 = vmul.f32 %v2295, 1.442695
  %v2781 = vpow.pop %v2780
  %v2782 = vmul.f32 %v2296, 1.442695
  %v2783 = vpow.pop %v2782
  %v2784 = vmul.f32 %v2297, 1.442695
  %v2785 = vpow.pop %v2784
  %v2786 = vmul.f32 %v2298, 1.442695
  %v2787 = vpow.pop %v2786
  %v2788 = vmul.f32 %v2299, 1.442695
  %v2789 = vpow.pop %v2788
  %v2790 = vmul.f32 %v2300, 1.442695
  %v2791 = vpow.pop %v2790
  %v2792 = vmul.f32 %v2301, 1.442695
  %v2793 = vpow.pop %v2792
  %v2794 = vmul.f32 %v2302, 1.442695
  %v2795 = vpow.pop %v2794
  %v2796 = vmul.f32 %v2303, 1.442695
  %v2797 = vpow.pop %v2796
  %v2798 = vmul.f32 %v2304, 1.442695
  %v2799 = vpow.pop %v2798
  %v2800 = vmul.f32 %v2305, 1.442695
  %v2801 = vpow.pop %v2800
  %v2802 = vmul.f32 %v2306, 1.442695
  %v2803 = vpow.pop %v2802
  %v2804 = vmul.f32 %v2307, 1.442695
  %v2805 = vpow.pop %v2804
  %v2806 = vmul.f32 %v2308, 1.442695
  %v2807 = vpow.pop %v2806
  %v2808 = vmul.f32 %v2309, 1.442695
  %v2809 = vpow.pop %v2808
  %v2810 = vmul.f32 %v2310, 1.442695
  %v2811 = vpow.pop %v2810
  %v2812 = vmul.f32 %v2311, 1.442695
  %v2813 = vpow.pop %v2812
  %v2814 = vmul.f32 %v2312, 1.442695
  %v2815 = vpow.pop %v2814
  %v2816 = vmul.f32 %v2313, 1.442695
  %v2817 = vpow.pop %v2816
  %v2818 = vmul.f32 %v2314, 1.442695
  %v2819 = vpow.pop %v2818
  %v2820 = vmul.f32 %v2315, 1.442695
  %v2821 = vpow.pop %v2820
  %v2822 = vmul.f32 %v2316, 1.442695
  %v2823 = vpow.pop %v2822
  %v2824 = vmul.f32 %v2317, 1.442695
  %v2825 = vpow.pop %v2824
  %v2826 = vmul.f32 %v2318, 1.442695
  %v2827 = vpow.pop %v2826
  %v2828 = vmul.f32 %v2319, 1.442695
  %v2829 = vpow.pop %v2828
  %v2830 = vmul.f32 %v2320, 1.442695
  %v2831 = vpow.pop %v2830
  %v2832 = vmul.f32 %v2321, 1.442695
  %v2833 = vpow.pop %v2832
  %vm2834 = vcmask 408576
  %2835 = vst.msk [vmem:[%s2] sm:$0xff] %vm2834, %v2323
  %2836 = vst.msk [vmem:[%s2 + $0x8] sm:$0xff] %vm2834, %v2325
  %2837 = vst.msk [vmem:[%s2 + $0x10] sm:$0xff] %vm2834, %v2327
  %2838 = vst.msk [vmem:[%s2 + $0x18] sm:$0xff] %vm2834, %v2329
  %2839 = vst.msk [vmem:[%s2 + $0x20] sm:$0xff] %vm2834, %v2331
  %2840 = vst.msk [vmem:[%s2 + $0x28] sm:$0xff] %vm2834, %v2333
  %2841 = vst.msk [vmem:[%s2 + $0x30] sm:$0xff] %vm2834, %v2335
  %2842 = vst.msk [vmem:[%s2 + $0x38] sm:$0xff] %vm2834, %v2337
  %2843 = vst.msk [vmem:[%s2 + $0x40] sm:$0xff] %vm2834, %v2339
  %2844 = vst.msk [vmem:[%s2 + $0x48] sm:$0xff] %vm2834, %v2341
  %2845 = vst.msk [vmem:[%s2 + $0x50] sm:$0xff] %vm2834, %v2343
  %2846 = vst.msk [vmem:[%s2 + $0x58] sm:$0xff] %vm2834, %v2345
  %2847 = vst.msk [vmem:[%s2 + $0x60] sm:$0xff] %vm2834, %v2347
  %2848 = vst.msk [vmem:[%s2 + $0x68] sm:$0xff] %vm2834, %v2349
  %2849 = vst.msk [vmem:[%s2 + $0x70] sm:$0xff] %vm2834, %v2351
  %2850 = vst.msk [vmem:[%s2 + $0x78] sm:$0xff] %vm2834, %v2353
  %2851 = vst.msk [vmem:[%s2 + $0x80] sm:$0xff] %vm2834, %v2355
  %2852 = vst.msk [vmem:[%s2 + $0x88] sm:$0xff] %vm2834, %v2357
  %2853 = vst.msk [vmem:[%s2 + $0x90] sm:$0xff] %vm2834, %v2359
  %2854 = vst.msk [vmem:[%s2 + $0x98] sm:$0xff] %vm2834, %v2361
  %2855 = vst.msk [vmem:[%s2 + $0xa0] sm:$0xff] %vm2834, %v2363
  %2856 = vst.msk [vmem:[%s2 + $0xa8] sm:$0xff] %vm2834, %v2365
  %2857 = vst.msk [vmem:[%s2 + $0xb0] sm:$0xff] %vm2834, %v2367
  %2858 = vst.msk [vmem:[%s2 + $0xb8] sm:$0xff] %vm2834, %v2369
  %2859 = vst.msk [vmem:[%s2 + $0xc0] sm:$0xff] %vm2834, %v2371
  %2860 = vst.msk [vmem:[%s2 + $0xc8] sm:$0xff] %vm2834, %v2373
  %2861 = vst.msk [vmem:[%s2 + $0xd0] sm:$0xff] %vm2834, %v2375
  %2862 = vst.msk [vmem:[%s2 + $0xd8] sm:$0xff] %vm2834, %v2377
  %2863 = vst.msk [vmem:[%s2 + $0xe0] sm:$0xff] %vm2834, %v2379
  %2864 = vst.msk [vmem:[%s2 + $0xe8] sm:$0xff] %vm2834, %v2381
  %2865 = vst.msk [vmem:[%s2 + $0xf0] sm:$0xff] %vm2834, %v2383
  %2866 = vst.msk [vmem:[%s2 + $0xf8] sm:$0xff] %vm2834, %v2385
  %2867 = vst.msk [vmem:[%s2 + $0x100] sm:$0xff] %vm2834, %v2387
  %2868 = vst.msk [vmem:[%s2 + $0x108] sm:$0xff] %vm2834, %v2389
  %2869 = vst.msk [vmem:[%s2 + $0x110] sm:$0xff] %vm2834, %v2391
  %2870 = vst.msk [vmem:[%s2 + $0x118] sm:$0xff] %vm2834, %v2393
  %2871 = vst.msk [vmem:[%s2 + $0x120] sm:$0xff] %vm2834, %v2395
  %2872 = vst.msk [vmem:[%s2 + $0x128] sm:$0xff] %vm2834, %v2397
  %2873 = vst.msk [vmem:[%s2 + $0x130] sm:$0xff] %vm2834, %v2399
  %2874 = vst.msk [vmem:[%s2 + $0x138] sm:$0xff] %vm2834, %v2401
  %2875 = vst.msk [vmem:[%s2 + $0x140] sm:$0xff] %vm2834, %v2403
  %2876 = vst.msk [vmem:[%s2 + $0x148] sm:$0xff] %vm2834, %v2405
  %2877 = vst.msk [vmem:[%s2 + $0x150] sm:$0xff] %vm2834, %v2407
  %2878 = vst.msk [vmem:[%s2 + $0x158] sm:$0xff] %vm2834, %v2409
  %2879 = vst.msk [vmem:[%s2 + $0x160] sm:$0xff] %vm2834, %v2411
  %2880 = vst.msk [vmem:[%s2 + $0x168] sm:$0xff] %vm2834, %v2413
  %2881 = vst.msk [vmem:[%s2 + $0x170] sm:$0xff] %vm2834, %v2415
  %2882 = vst.msk [vmem:[%s2 + $0x178] sm:$0xff] %vm2834, %v2417
  %2883 = vst.msk [vmem:[%s2 + $0x180] sm:$0xff] %vm2834, %v2419
  %2884 = vst.msk [vmem:[%s2 + $0x188] sm:$0xff] %vm2834, %v2421
  %2885 = vst.msk [vmem:[%s2 + $0x190] sm:$0xff] %vm2834, %v2423
  %2886 = vst.msk [vmem:[%s2 + $0x198] sm:$0xff] %vm2834, %v2425
  %2887 = vst.msk [vmem:[%s2 + $0x1a0] sm:$0xff] %vm2834, %v2427
  %2888 = vst.msk [vmem:[%s2 + $0x1a8] sm:$0xff] %vm2834, %v2429
  %2889 = vst.msk [vmem:[%s2 + $0x1b0] sm:$0xff] %vm2834, %v2431
  %2890 = vst.msk [vmem:[%s2 + $0x1b8] sm:$0xff] %vm2834, %v2433
  %2891 = vst.msk [vmem:[%s2 + $0x1c0] sm:$0xff] %vm2834, %v2435
  %2892 = vst.msk [vmem:[%s2 + $0x1c8] sm:$0xff] %vm2834, %v2437
  %2893 = vst.msk [vmem:[%s2 + $0x1d0] sm:$0xff] %vm2834, %v2439
  %2894 = vst.msk [vmem:[%s2 + $0x1d8] sm:$0xff] %vm2834, %v2441
  %2895 = vst.msk [vmem:[%s2 + $0x1e0] sm:$0xff] %vm2834, %v2443
  %2896 = vst.msk [vmem:[%s2 + $0x1e8] sm:$0xff] %vm2834, %v2445
  %2897 = vst.msk [vmem:[%s2 + $0x1f0] sm:$0xff] %vm2834, %v2447
  %2898 = vst.msk [vmem:[%s2 + $0x1f8] sm:$0xff] %vm2834, %v2449
  %2899 = vst.msk [vmem:[%s2 + $0x200] sm:$0xff] %vm2834, %v2451
  %2900 = vst.msk [vmem:[%s2 + $0x208] sm:$0xff] %vm2834, %v2453
  %2901 = vst.msk [vmem:[%s2 + $0x210] sm:$0xff] %vm2834, %v2455
  %2902 = vst.msk [vmem:[%s2 + $0x218] sm:$0xff] %vm2834, %v2457
  %2903 = vst.msk [vmem:[%s2 + $0x220] sm:$0xff] %vm2834, %v2459
  %2904 = vst.msk [vmem:[%s2 + $0x228] sm:$0xff] %vm2834, %v2461
  %2905 = vst.msk [vmem:[%s2 + $0x230] sm:$0xff] %vm2834, %v2463
  %2906 = vst.msk [vmem:[%s2 + $0x238] sm:$0xff] %vm2834, %v2465
  %2907 = vst.msk [vmem:[%s2 + $0x240] sm:$0xff] %vm2834, %v2467
  %2908 = vst.msk [vmem:[%s2 + $0x248] sm:$0xff] %vm2834, %v2469
  %2909 = vst.msk [vmem:[%s2 + $0x250] sm:$0xff] %vm2834, %v2471
  %2910 = vst.msk [vmem:[%s2 + $0x258] sm:$0xff] %vm2834, %v2473
  %2911 = vst.msk [vmem:[%s2 + $0x260] sm:$0xff] %vm2834, %v2475
  %2912 = vst.msk [vmem:[%s2 + $0x268] sm:$0xff] %vm2834, %v2477
  %2913 = vst.msk [vmem:[%s2 + $0x270] sm:$0xff] %vm2834, %v2479
  %2914 = vst.msk [vmem:[%s2 + $0x278] sm:$0xff] %vm2834, %v2481
  %2915 = vst.msk [vmem:[%s2 + $0x280] sm:$0xff] %vm2834, %v2483
  %2916 = vst.msk [vmem:[%s2 + $0x288] sm:$0xff] %vm2834, %v2485
  %2917 = vst.msk [vmem:[%s2 + $0x290] sm:$0xff] %vm2834, %v2487
  %2918 = vst.msk [vmem:[%s2 + $0x298] sm:$0xff] %vm2834, %v2489
  %2919 = vst.msk [vmem:[%s2 + $0x2a0] sm:$0xff] %vm2834, %v2491
  %2920 = vst.msk [vmem:[%s2 + $0x2a8] sm:$0xff] %vm2834, %v2493
  %2921 = vst.msk [vmem:[%s2 + $0x2b0] sm:$0xff] %vm2834, %v2495
  %2922 = vst.msk [vmem:[%s2 + $0x2b8] sm:$0xff] %vm2834, %v2497
  %2923 = vst.msk [vmem:[%s2 + $0x2c0] sm:$0xff] %vm2834, %v2499
  %2924 = vst.msk [vmem:[%s2 + $0x2c8] sm:$0xff] %vm2834, %v2501
  %2925 = vst.msk [vmem:[%s2 + $0x2d0] sm:$0xff] %vm2834, %v2503
  %2926 = vst.msk [vmem:[%s2 + $0x2d8] sm:$0xff] %vm2834, %v2505
  %2927 = vst.msk [vmem:[%s2 + $0x2e0] sm:$0xff] %vm2834, %v2507
  %2928 = vst.msk [vmem:[%s2 + $0x2e8] sm:$0xff] %vm2834, %v2509
  %2929 = vst.msk [vmem:[%s2 + $0x2f0] sm:$0xff] %vm2834, %v2511
  %2930 = vst.msk [vmem:[%s2 + $0x2f8] sm:$0xff] %vm2834, %v2513
  %2931 = vst.msk [vmem:[%s2 + $0x300] sm:$0xff] %vm2834, %v2515
  %2932 = vst.msk [vmem:[%s2 + $0x308] sm:$0xff] %vm2834, %v2517
  %2933 = vst.msk [vmem:[%s2 + $0x310] sm:$0xff] %vm2834, %v2519
  %2934 = vst.msk [vmem:[%s2 + $0x318] sm:$0xff] %vm2834, %v2521
  %2935 = vst.msk [vmem:[%s2 + $0x320] sm:$0xff] %vm2834, %v2523
  %2936 = vst.msk [vmem:[%s2 + $0x328] sm:$0xff] %vm2834, %v2525
  %2937 = vst.msk [vmem:[%s2 + $0x330] sm:$0xff] %vm2834, %v2527
  %2938 = vst.msk [vmem:[%s2 + $0x338] sm:$0xff] %vm2834, %v2529
  %2939 = vst.msk [vmem:[%s2 + $0x340] sm:$0xff] %vm2834, %v2531
  %2940 = vst.msk [vmem:[%s2 + $0x348] sm:$0xff] %vm2834, %v2533
  %2941 = vst.msk [vmem:[%s2 + $0x350] sm:$0xff] %vm2834, %v2535
  %2942 = vst.msk [vmem:[%s2 + $0x358] sm:$0xff] %vm2834, %v2537
  %2943 = vst.msk [vmem:[%s2 + $0x360] sm:$0xff] %vm2834, %v2539
  %2944 = vst.msk [vmem:[%s2 + $0x368] sm:$0xff] %vm2834, %v2541
  %2945 = vst.msk [vmem:[%s2 + $0x370] sm:$0xff] %vm2834, %v2543
  %2946 = vst.msk [vmem:[%s2 + $0x378] sm:$0xff] %vm2834, %v2545
  %2947 = vst.msk [vmem:[%s2 + $0x380] sm:$0xff] %vm2834, %v2547
  %2948 = vst.msk [vmem:[%s2 + $0x388] sm:$0xff] %vm2834, %v2549
  %2949 = vst.msk [vmem:[%s2 + $0x390] sm:$0xff] %vm2834, %v2551
  %2950 = vst.msk [vmem:[%s2 + $0x398] sm:$0xff] %vm2834, %v2553
  %2951 = vst.msk [vmem:[%s2 + $0x3a0] sm:$0xff] %vm2834, %v2555
  %2952 = vst.msk [vmem:[%s2 + $0x3a8] sm:$0xff] %vm2834, %v2557
  %2953 = vst.msk [vmem:[%s2 + $0x3b0] sm:$0xff] %vm2834, %v2559
  %2954 = vst.msk [vmem:[%s2 + $0x3b8] sm:$0xff] %vm2834, %v2561
  %2955 = vst.msk [vmem:[%s2 + $0x3c0] sm:$0xff] %vm2834, %v2563
  %2956 = vst.msk [vmem:[%s2 + $0x3c8] sm:$0xff] %vm2834, %v2565
  %2957 = vst.msk [vmem:[%s2 + $0x3d0] sm:$0xff] %vm2834, %v2567
  %2958 = vst.msk [vmem:[%s2 + $0x3d8] sm:$0xff] %vm2834, %v2569
  %2959 = vst.msk [vmem:[%s2 + $0x3e0] sm:$0xff] %vm2834, %v2571
  %2960 = vst.msk [vmem:[%s2 + $0x3e8] sm:$0xff] %vm2834, %v2573
  %2961 = vst.msk [vmem:[%s2 + $0x3f0] sm:$0xff] %vm2834, %v2575
  %2962 = vst.msk [vmem:[%s2 + $0x3f8] sm:$0xff] %vm2834, %v2577
  %2963 = vst.msk [vmem:[%s2 + $0x400] sm:$0xff] %vm2834, %v2579
  %2964 = vst.msk [vmem:[%s2 + $0x408] sm:$0xff] %vm2834, %v2581
  %2965 = vst.msk [vmem:[%s2 + $0x410] sm:$0xff] %vm2834, %v2583
  %2966 = vst.msk [vmem:[%s2 + $0x418] sm:$0xff] %vm2834, %v2585
  %2967 = vst.msk [vmem:[%s2 + $0x420] sm:$0xff] %vm2834, %v2587
  %2968 = vst.msk [vmem:[%s2 + $0x428] sm:$0xff] %vm2834, %v2589
  %2969 = vst.msk [vmem:[%s2 + $0x430] sm:$0xff] %vm2834, %v2591
  %2970 = vst.msk [vmem:[%s2 + $0x438] sm:$0xff] %vm2834, %v2593
  %2971 = vst.msk [vmem:[%s2 + $0x440] sm:$0xff] %vm2834, %v2595
  %2972 = vst.msk [vmem:[%s2 + $0x448] sm:$0xff] %vm2834, %v2597
  %2973 = vst.msk [vmem:[%s2 + $0x450] sm:$0xff] %vm2834, %v2599
  %2974 = vst.msk [vmem:[%s2 + $0x458] sm:$0xff] %vm2834, %v2601
  %2975 = vst.msk [vmem:[%s2 + $0x460] sm:$0xff] %vm2834, %v2603
  %2976 = vst.msk [vmem:[%s2 + $0x468] sm:$0xff] %vm2834, %v2605
  %2977 = vst.msk [vmem:[%s2 + $0x470] sm:$0xff] %vm2834, %v2607
  %2978 = vst.msk [vmem:[%s2 + $0x478] sm:$0xff] %vm2834, %v2609
  %2979 = vst.msk [vmem:[%s2 + $0x480] sm:$0xff] %vm2834, %v2611
  %2980 = vst.msk [vmem:[%s2 + $0x488] sm:$0xff] %vm2834, %v2613
  %2981 = vst.msk [vmem:[%s2 + $0x490] sm:$0xff] %vm2834, %v2615
  %2982 = vst.msk [vmem:[%s2 + $0x498] sm:$0xff] %vm2834, %v2617
  %2983 = vst.msk [vmem:[%s2 + $0x4a0] sm:$0xff] %vm2834, %v2619
  %2984 = vst.msk [vmem:[%s2 + $0x4a8] sm:$0xff] %vm2834, %v2621
  %2985 = vst.msk [vmem:[%s2 + $0x4b0] sm:$0xff] %vm2834, %v2623
  %2986 = vst.msk [vmem:[%s2 + $0x4b8] sm:$0xff] %vm2834, %v2625
  %2987 = vst.msk [vmem:[%s2 + $0x4c0] sm:$0xff] %vm2834, %v2627
  %2988 = vst.msk [vmem:[%s2 + $0x4c8] sm:$0xff] %vm2834, %v2629
  %2989 = vst.msk [vmem:[%s2 + $0x4d0] sm:$0xff] %vm2834, %v2631
  %2990 = vst.msk [vmem:[%s2 + $0x4d8] sm:$0xff] %vm2834, %v2633
  %2991 = vst.msk [vmem:[%s2 + $0x4e0] sm:$0xff] %vm2834, %v2635
  %2992 = vst.msk [vmem:[%s2 + $0x4e8] sm:$0xff] %vm2834, %v2637
  %2993 = vst.msk [vmem:[%s2 + $0x4f0] sm:$0xff] %vm2834, %v2639
  %2994 = vst.msk [vmem:[%s2 + $0x4f8] sm:$0xff] %vm2834, %v2641
  %2995 = vst.msk [vmem:[%s2 + $0x500] sm:$0xff] %vm2834, %v2643
  %2996 = vst.msk [vmem:[%s2 + $0x508] sm:$0xff] %vm2834, %v2645
  %2997 = vst.msk [vmem:[%s2 + $0x510] sm:$0xff] %vm2834, %v2647
  %2998 = vst.msk [vmem:[%s2 + $0x518] sm:$0xff] %vm2834, %v2649
  %2999 = vst.msk [vmem:[%s2 + $0x520] sm:$0xff] %vm2834, %v2651
  %3000 = vst.msk [vmem:[%s2 + $0x528] sm:$0xff] %vm2834, %v2653
  %3001 = vst.msk [vmem:[%s2 + $0x530] sm:$0xff] %vm2834, %v2655
  %3002 = vst.msk [vmem:[%s2 + $0x538] sm:$0xff] %vm2834, %v2657
  %3003 = vst.msk [vmem:[%s2 + $0x540] sm:$0xff] %vm2834, %v2659
  %3004 = vst.msk [vmem:[%s2 + $0x548] sm:$0xff] %vm2834, %v2661
  %3005 = vst.msk [vmem:[%s2 + $0x550] sm:$0xff] %vm2834, %v2663
  %3006 = vst.msk [vmem:[%s2 + $0x558] sm:$0xff] %vm2834, %v2665
  %3007 = vst.msk [vmem:[%s2 + $0x560] sm:$0xff] %vm2834, %v2667
  %3008 = vst.msk [vmem:[%s2 + $0x568] sm:$0xff] %vm2834, %v2669
  %3009 = vst.msk [vmem:[%s2 + $0x570] sm:$0xff] %vm2834, %v2671
  %3010 = vst.msk [vmem:[%s2 + $0x578] sm:$0xff] %vm2834, %v2673
  %3011 = vst.msk [vmem:[%s2 + $0x580] sm:$0xff] %vm2834, %v2675
  %3012 = vst.msk [vmem:[%s2 + $0x588] sm:$0xff] %vm2834, %v2677
  %3013 = vst.msk [vmem:[%s2 + $0x590] sm:$0xff] %vm2834, %v2679
  %3014 = vst.msk [vmem:[%s2 + $0x598] sm:$0xff] %vm2834, %v2681
  %3015 = vst.msk [vmem:[%s2 + $0x5a0] sm:$0xff] %vm2834, %v2683
  %3016 = vst.msk [vmem:[%s2 + $0x5a8] sm:$0xff] %vm2834, %v2685
  %3017 = vst.msk [vmem:[%s2 + $0x5b0] sm:$0xff] %vm2834, %v2687
  %3018 = vst.msk [vmem:[%s2 + $0x5b8] sm:$0xff] %vm2834, %v2689
  %3019 = vst.msk [vmem:[%s2 + $0x5c0] sm:$0xff] %vm2834, %v2691
  %3020 = vst.msk [vmem:[%s2 + $0x5c8] sm:$0xff] %vm2834, %v2693
  %3021 = vst.msk [vmem:[%s2 + $0x5d0] sm:$0xff] %vm2834, %v2695
  %3022 = vst.msk [vmem:[%s2 + $0x5d8] sm:$0xff] %vm2834, %v2697
  %3023 = vst.msk [vmem:[%s2 + $0x5e0] sm:$0xff] %vm2834, %v2699
  %3024 = vst.msk [vmem:[%s2 + $0x5e8] sm:$0xff] %vm2834, %v2701
  %3025 = vst.msk [vmem:[%s2 + $0x5f0] sm:$0xff] %vm2834, %v2703
  %3026 = vst.msk [vmem:[%s2 + $0x5f8] sm:$0xff] %vm2834, %v2705
  %3027 = vst.msk [vmem:[%s2 + $0x600] sm:$0xff] %vm2834, %v2707
  %3028 = vst.msk [vmem:[%s2 + $0x608] sm:$0xff] %vm2834, %v2709
  %3029 = vst.msk [vmem:[%s2 + $0x610] sm:$0xff] %vm2834, %v2711
  %3030 = vst.msk [vmem:[%s2 + $0x618] sm:$0xff] %vm2834, %v2713
  %3031 = vst.msk [vmem:[%s2 + $0x620] sm:$0xff] %vm2834, %v2715
  %3032 = vst.msk [vmem:[%s2 + $0x628] sm:$0xff] %vm2834, %v2717
  %3033 = vst.msk [vmem:[%s2 + $0x630] sm:$0xff] %vm2834, %v2719
  %3034 = vst.msk [vmem:[%s2 + $0x638] sm:$0xff] %vm2834, %v2721
  %3035 = vst.msk [vmem:[%s2 + $0x640] sm:$0xff] %vm2834, %v2723
  %3036 = vst.msk [vmem:[%s2 + $0x648] sm:$0xff] %vm2834, %v2725
  %3037 = vst.msk [vmem:[%s2 + $0x650] sm:$0xff] %vm2834, %v2727
  %3038 = vst.msk [vmem:[%s2 + $0x658] sm:$0xff] %vm2834, %v2729
  %3039 = vst.msk [vmem:[%s2 + $0x660] sm:$0xff] %vm2834, %v2731
  %3040 = vst.msk [vmem:[%s2 + $0x668] sm:$0xff] %vm2834, %v2733
  %3041 = vst.msk [vmem:[%s2 + $0x670] sm:$0xff] %vm2834, %v2735
  %3042 = vst.msk [vmem:[%s2 + $0x678] sm:$0xff] %vm2834, %v2737
  %3043 = vst.msk [vmem:[%s2 + $0x680] sm:$0xff] %vm2834, %v2739
  %3044 = vst.msk [vmem:[%s2 + $0x688] sm:$0xff] %vm2834, %v2741
  %3045 = vst.msk [vmem:[%s2 + $0x690] sm:$0xff] %vm2834, %v2743
  %3046 = vst.msk [vmem:[%s2 + $0x698] sm:$0xff] %vm2834, %v2745
  %3047 = vst.msk [vmem:[%s2 + $0x6a0] sm:$0xff] %vm2834, %v2747
  %3048 = vst.msk [vmem:[%s2 + $0x6a8] sm:$0xff] %vm2834, %v2749
  %3049 = vst.msk [vmem:[%s2 + $0x6b0] sm:$0xff] %vm2834, %v2751
  %3050 = vst.msk [vmem:[%s2 + $0x6b8] sm:$0xff] %vm2834, %v2753
  %3051 = vst.msk [vmem:[%s2 + $0x6c0] sm:$0xff] %vm2834, %v2755
  %3052 = vst.msk [vmem:[%s2 + $0x6c8] sm:$0xff] %vm2834, %v2757
  %3053 = vst.msk [vmem:[%s2 + $0x6d0] sm:$0xff] %vm2834, %v2759
  %3054 = vst.msk [vmem:[%s2 + $0x6d8] sm:$0xff] %vm2834, %v2761
  %3055 = vst.msk [vmem:[%s2 + $0x6e0] sm:$0xff] %vm2834, %v2763
  %3056 = vst.msk [vmem:[%s2 + $0x6e8] sm:$0xff] %vm2834, %v2765
  %3057 = vst.msk [vmem:[%s2 + $0x6f0] sm:$0xff] %vm2834, %v2767
  %3058 = vst.msk [vmem:[%s2 + $0x6f8] sm:$0xff] %vm2834, %v2769
  %3059 = vst.msk [vmem:[%s2 + $0x700] sm:$0xff] %vm2834, %v2771
  %3060 = vst.msk [vmem:[%s2 + $0x708] sm:$0xff] %vm2834, %v2773
  %3061 = vst.msk [vmem:[%s2 + $0x710] sm:$0xff] %vm2834, %v2775
  %3062 = vst.msk [vmem:[%s2 + $0x718] sm:$0xff] %vm2834, %v2777
  %3063 = vst.msk [vmem:[%s2 + $0x720] sm:$0xff] %vm2834, %v2779
  %3064 = vst.msk [vmem:[%s2 + $0x728] sm:$0xff] %vm2834, %v2781
  %3065 = vst.msk [vmem:[%s2 + $0x730] sm:$0xff] %vm2834, %v2783
  %3066 = vst.msk [vmem:[%s2 + $0x738] sm:$0xff] %vm2834, %v2785
  %3067 = vst.msk [vmem:[%s2 + $0x740] sm:$0xff] %vm2834, %v2787
  %3068 = vst.msk [vmem:[%s2 + $0x748] sm:$0xff] %vm2834, %v2789
  %3069 = vst.msk [vmem:[%s2 + $0x750] sm:$0xff] %vm2834, %v2791
  %3070 = vst.msk [vmem:[%s2 + $0x758] sm:$0xff] %vm2834, %v2793
  %3071 = vst.msk [vmem:[%s2 + $0x760] sm:$0xff] %vm2834, %v2795
  %3072 = vst.msk [vmem:[%s2 + $0x768] sm:$0xff] %vm2834, %v2797
  %3073 = vst.msk [vmem:[%s2 + $0x770] sm:$0xff] %vm2834, %v2799
  %3074 = vst.msk [vmem:[%s2 + $0x778] sm:$0xff] %vm2834, %v2801
  %3075 = vst.msk [vmem:[%s2 + $0x780] sm:$0xff] %vm2834, %v2803
  %3076 = vst.msk [vmem:[%s2 + $0x788] sm:$0xff] %vm2834, %v2805
  %3077 = vst.msk [vmem:[%s2 + $0x790] sm:$0xff] %vm2834, %v2807
  %3078 = vst.msk [vmem:[%s2 + $0x798] sm:$0xff] %vm2834, %v2809
  %3079 = vst.msk [vmem:[%s2 + $0x7a0] sm:$0xff] %vm2834, %v2811
  %3080 = vst.msk [vmem:[%s2 + $0x7a8] sm:$0xff] %vm2834, %v2813
  %3081 = vst.msk [vmem:[%s2 + $0x7b0] sm:$0xff] %vm2834, %v2815
  %3082 = vst.msk [vmem:[%s2 + $0x7b8] sm:$0xff] %vm2834, %v2817
  %3083 = vst.msk [vmem:[%s2 + $0x7c0] sm:$0xff] %vm2834, %v2819
  %3084 = vst.msk [vmem:[%s2 + $0x7c8] sm:$0xff] %vm2834, %v2821
  %3085 = vst.msk [vmem:[%s2 + $0x7d0] sm:$0xff] %vm2834, %v2823
  %3086 = vst.msk [vmem:[%s2 + $0x7d8] sm:$0xff] %vm2834, %v2825
  %3087 = vst.msk [vmem:[%s2 + $0x7e0] sm:$0xff] %vm2834, %v2827
  %3088 = vst.msk [vmem:[%s2 + $0x7e8] sm:$0xff] %vm2834, %v2829
  %3089 = vst.msk [vmem:[%s2 + $0x7f0] sm:$0xff] %vm2834, %v2831
  %3090 = vst.msk [vmem:[%s2 + $0x7f8] sm:$0xff] %vm2834, %v2833
  // Predicated region
  $region10: #{tpu_custom_call.1} parent=0 // pred_check
    _
  $region11: #{tpu_custom_call.1} parent=0 // pred_check_branch
    %3092 = sbr.rel (0) target = $region13
  $region12: #{tpu_custom_call.1} parent=0 // pred_region
    _
  $region13: #{tpu_custom_call.1} parent=0 // pred_fallthru
    _
  // Predicated region
  $region14: #{tpu_custom_call.1} parent=0 // pred_check
    _
  $region15: #{tpu_custom_call.1} parent=0 // pred_check_branch
    %3094 = sbr.rel (0) target = $region17
  $region16: #{tpu_custom_call.1} parent=0 // pred_region
    _
  $region17: #{tpu_custom_call.1} parent=0 // pred_fallthru
    _

</llo_original>
